<compile_context>
chip_gen: v7x
topology: tpu7x:2x2x1
jax: 0.10.0
libtpu: 0.0.40
codegen_flags: <defaults>
</compile_context>

<pallas_src>
import functools

import jax
import jax.numpy as jnp
from jax import lax
from jax.experimental import pallas as pl
from jax.experimental.pallas import tpu as pltpu


def _rnn_fused_kernel(x2_ref, h0_ref, wih_t_ref, whh_t_ref, bias_ref,
                      wfc_t_ref, bfc_ref, out_ref, hn_ref, hs_scratch,
                      *, seq_len):
    """Single-invocation fused RNN + fc (all dims lane/sublane padded).

    x2_ref   : (S*Bp, I)    time-flattened, batch-padded input
    h0_ref   : (Bp, Hp)     initial hidden (zero-padded to Hp=128 lanes)
    wih_t_ref: (I, Hp)      W_ih^T  (columns H.. are zero)
    whh_t_ref: (Hp, Hp)     W_hh^T  (rows/cols H.. are zero)
    bias_ref : (1, Hp)      b_ih + b_hh (f32, cols H.. zero)
    wfc_t_ref: (Hp, Op)     W_fc^T  (rows H.. / cols O.. are zero)
    bfc_ref  : (1, Op)      b_fc    (cols O.. zero)
    out_ref  : (S*Bp, Op)
    hn_ref   : (Bp, Hp)
    hs_scratch: (S*Bp, Hp) f32 VMEM slab; holds pre-activations, then h_t.
    """
    Bp = h0_ref.shape[0]  # padded batch, multiple of 8 (static)

    # ---- 1) Hoisted input projection: one big matmul over all timesteps ----
    pre = (jnp.dot(x2_ref[...], wih_t_ref[...],
                   preferred_element_type=jnp.float32)
           + bias_ref[...])                       # (S*Bp, Hp)
    hs_scratch[...] = pre                         # slab reused: pre -> h_t

    # ---- 2) Serial recurrence: only h @ W_hh^T + tanh on the critical path --
    # Padded hidden columns stay exactly zero: their pre-activation is zero and
    # tanh(0) = 0, so the recurrence never contaminates the real H columns.
    def step(t, h):
        row = pl.multiple_of(t * Bp, 8)           # tile-aligned sublane start
        pre_t = hs_scratch[pl.ds(row, Bp), :]     # (Bp, Hp), unmasked vld
        h_new = jnp.tanh(
            pre_t + jnp.dot(h.astype(whh_t_ref.dtype), whh_t_ref[...],
                            preferred_element_type=jnp.float32))
        hs_scratch[pl.ds(row, Bp), :] = h_new     # single unmasked vst per step
        return h_new

    h_last = lax.fori_loop(0, seq_len, step,
                           h0_ref[...].astype(jnp.float32),
                           unroll=min(seq_len, 8))

    # ---- 3) Hoisted fc: one big matmul, single dense lane-aligned store -----
    y = (jnp.dot(hs_scratch[...].astype(wfc_t_ref.dtype), wfc_t_ref[...],
                 preferred_element_type=jnp.float32)
         + bfc_ref[...])
    out_ref[...] = y.astype(out_ref.dtype)        # (S*Bp, 128): unmasked vst
    hn_ref[...] = h_last.astype(hn_ref.dtype)     # written once, after the loop


def rnn_model_forward(x, h0, w_ih, w_hh, b_ih, b_hh, w_fc, b_fc,
                      *, compute_dtype=jnp.float32):
    """x: (S, B, I); h0: (1, B, H). Returns (output (S,B,O), hidden (1,B,H)).

    compute_dtype: dtype fed to the MXU (accumulation is always f32).
    Use jnp.bfloat16 on v6e/v7x for ~2x MXU throughput / half weight VMEM
    (loosen the parity tolerance accordingly).
    """
    S, B, I = x.shape
    H = w_ih.shape[0]
    O = w_fc.shape[0]

    LANE = 128
    Bp = ((B + 7) // 8) * 8                       # pad batch to a sublane tile
    Hp = ((H + LANE - 1) // LANE) * LANE          # lane-pad hidden dim
    Op = ((O + LANE - 1) // LANE) * LANE          # lane-pad output dim

    # Pad batch and flatten time into the sublane axis so both hoisted matmuls
    # and the output store operate on one dense, lane-aligned slab.
    x_p = jnp.zeros((S, Bp, I), x.dtype).at[:, :B, :].set(x)
    x2 = x_p.reshape(S * Bp, I).astype(compute_dtype)
    h0_p = (jnp.zeros((Bp, Hp), jnp.float32)
            .at[:B, :H].set(h0[0].astype(jnp.float32)))

    wih_t = (jnp.zeros((I, Hp), jnp.float32).at[:, :H].set(w_ih.T)
             ).astype(compute_dtype)              # (I, Hp)
    whh_t = (jnp.zeros((Hp, Hp), jnp.float32).at[:H, :H].set(w_hh.T)
             ).astype(compute_dtype)              # (Hp, Hp)
    wfc_t = (jnp.zeros((Hp, Op), jnp.float32).at[:H, :O].set(w_fc.T)
             ).astype(compute_dtype)              # (Hp, Op)
    bias = (jnp.zeros((1, Hp), jnp.float32)
            .at[0, :H].set((b_ih + b_hh).astype(jnp.float32)))
    bfc2 = jnp.zeros((1, Op), jnp.float32).at[0, :O].set(b_fc.astype(jnp.float32))

    kernel = functools.partial(_rnn_fused_kernel, seq_len=S)

    out2, hn_p = pl.pallas_call(
        kernel,
        out_shape=(jax.ShapeDtypeStruct((S * Bp, Op), x.dtype),
                   jax.ShapeDtypeStruct((Bp, Hp), x.dtype)),
        grid_spec=pltpu.PrefetchScalarGridSpec(
            num_scalar_prefetch=0,
            grid=(1,),                            # recurrence is an in-kernel loop
            in_specs=[
                pl.BlockSpec((S * Bp, I), lambda i: (0, 0)),   # x (time-flattened)
                pl.BlockSpec((Bp, Hp), lambda i: (0, 0)),      # h0
                pl.BlockSpec((I, Hp), lambda i: (0, 0)),       # W_ih^T
                pl.BlockSpec((Hp, Hp), lambda i: (0, 0)),      # W_hh^T
                pl.BlockSpec((1, Hp), lambda i: (0, 0)),       # b_ih + b_hh
                pl.BlockSpec((Hp, Op), lambda i: (0, 0)),      # W_fc^T
                pl.BlockSpec((1, Op), lambda i: (0, 0)),       # b_fc
            ],
            out_specs=[
                pl.BlockSpec((S * Bp, Op), lambda i: (0, 0)),  # all outputs, one store
                pl.BlockSpec((Bp, Hp), lambda i: (0, 0)),      # final hidden
            ],
            scratch_shapes=[pltpu.VMEM((S * Bp, Hp), jnp.float32)],
        ),
        compiler_params=pltpu.CompilerParams(
            dimension_semantics=("arbitrary",),
            # Explicit VMEM budget so the monolithic-slab design stays within
            # v7x's 64 MiB physical / 32 MiB scoped VMEM (plenty at toy shapes).
            vmem_limit_bytes=32 * 1024 * 1024,
        ),
    )(x2, h0_p, wih_t, whh_t, bias, wfc_t, bfc2)

    out = out2.reshape(S, Bp, Op)[:, :B, :O]      # strip batch + lane padding
    hn = hn_p[:B, :H][None]
    return out, hn


def reference_forward(x, h0, w_ih, w_hh, b_ih, b_hh, w_fc, b_fc):
    """Pure-JAX reference of the PyTorch forward."""
    def step(h, x_t):
        h_new = jnp.tanh(x_t @ w_ih.T + b_ih + h @ w_hh.T + b_hh)
        return h_new, h_new
    h_last, hs = jax.lax.scan(step, h0[0], x)
    out = hs @ w_fc.T + b_fc
    return out, h_last[None]


if __name__ == "__main__":
    # Small shapes implied by the module: seq=8, batch=2, input=16, hidden=32, output=8
    S, B, I, H, O = 8, 2, 16, 32, 8

    key = jax.random.PRNGKey(0)
    ks = jax.random.split(key, 8)
    bound = 1.0 / jnp.sqrt(H)  # PyTorch default init range for RNN / Linear params

    w_ih = jax.random.uniform(ks[0], (H, I), jnp.float32, -bound, bound)
    w_hh = jax.random.uniform(ks[1], (H, H), jnp.float32, -bound, bound)
    b_ih = jax.random.uniform(ks[2], (H,), jnp.float32, -bound, bound)
    b_hh = jax.random.uniform(ks[3], (H,), jnp.float32, -bound, bound)
    w_fc = jax.random.uniform(ks[4], (O, H), jnp.float32, -bound, bound)
    b_fc = jax.random.uniform(ks[5], (O,), jnp.float32, -bound, bound)

    x = jax.random.normal(ks[6], (S, B, I), jnp.float32)
    h0 = jax.random.normal(ks[7], (1, B, H), jnp.float32)

    # compute_dtype=jnp.float32 keeps the 1e-5 parity check; use jnp.bfloat16
    # on v6e/v7x for ~2x MXU throughput (then loosen tolerance to ~2e-2).
    out, hn = rnn_model_forward(x, h0, w_ih, w_hh, b_ih, b_hh, w_fc, b_fc)
    out = jax.block_until_ready(out)
    hn = jax.block_until_ready(hn)

    ref_out, ref_hn = reference_forward(x, h0, w_ih, w_hh, b_ih, b_hh, w_fc, b_fc)
    assert out.shape == (S, B, O) and hn.shape == (1, B, H)
    assert jnp.allclose(out, ref_out, atol=1e-5, rtol=1e-5)
    assert jnp.allclose(hn, ref_hn, atol=1e-5, rtol=1e-5)

    print("KERNEL_OK")
</pallas_src>

<mosaic_0001>
module attributes {stable_mosaic.version = 11 : i64} {
  func.func @_rnn_fused_kernel(%arg0: i32, %arg1: memref<64x16xf32, #tpu.memory_space<vmem>>, %arg2: memref<8x128xf32, #tpu.memory_space<vmem>>, %arg3: memref<16x128xf32, #tpu.memory_space<vmem>>, %arg4: memref<128x128xf32, #tpu.memory_space<vmem>>, %arg5: memref<1x128xf32, #tpu.memory_space<vmem>>, %arg6: memref<128x128xf32, #tpu.memory_space<vmem>>, %arg7: memref<1x128xf32, #tpu.memory_space<vmem>>, %arg8: memref<64x128xf32, #tpu.memory_space<vmem>>, %arg9: memref<8x128xf32, #tpu.memory_space<vmem>>, %arg10: memref<64x128xf32, #tpu.memory_space<vmem>>) attributes {dimension_semantics = [#tpu.dimension_semantics<arbitrary>], iteration_bounds = array<i64: 1>, scalar_prefetch = 0 : i64, scratch_operands = 1 : i64, tpu.core_type = #tpu.core_type<tc>, window_params = [{pipeline_mode = #tpu.pipeline_mode<synchronous>, transform_indices = @transform_0, window_bounds = array<i64: 64, 16>}, {pipeline_mode = #tpu.pipeline_mode<synchronous>, transform_indices = @transform_1, window_bounds = array<i64: 8, 128>}, {pipeline_mode = #tpu.pipeline_mode<synchronous>, transform_indices = @transform_2, window_bounds = array<i64: 16, 128>}, {pipeline_mode = #tpu.pipeline_mode<synchronous>, transform_indices = @transform_3, window_bounds = array<i64: 128, 128>}, {pipeline_mode = #tpu.pipeline_mode<synchronous>, transform_indices = @transform_4, window_bounds = array<i64: 1, 128>}, {pipeline_mode = #tpu.pipeline_mode<synchronous>, transform_indices = @transform_5, window_bounds = array<i64: 128, 128>}, {pipeline_mode = #tpu.pipeline_mode<synchronous>, transform_indices = @transform_6, window_bounds = array<i64: 1, 128>}, {pipeline_mode = #tpu.pipeline_mode<synchronous>, transform_indices = @transform_7, window_bounds = array<i64: 64, 128>}, {pipeline_mode = #tpu.pipeline_mode<synchronous>, transform_indices = @transform_8, window_bounds = array<i64: 8, 128>}]} {
    %c0 = arith.constant 0 : index
    %c0_0 = arith.constant 0 : index
    %0 = vector.load %arg1[%c0, %c0_0] : memref<64x16xf32, #tpu.memory_space<vmem>>, vector<64x16xf32>
    %c0_1 = arith.constant 0 : index
    %c0_2 = arith.constant 0 : index
    %1 = vector.load %arg3[%c0_1, %c0_2] : memref<16x128xf32, #tpu.memory_space<vmem>>, vector<16x128xf32>
    %cst = arith.constant dense<0.000000e+00> : vector<64x128xf32>
    %2 = tpu.matmul %0, %1, %cst {dimension_numbers = #tpu.dot_dimension_numbers<[1], [0], [0], [1], [0, 0, 1, 1], [], []>} : vector<64x16xf32>, vector<16x128xf32>, vector<64x128xf32> -> vector<64x128xf32>
    %c0_3 = arith.constant 0 : index
    %c0_4 = arith.constant 0 : index
    %3 = vector.load %arg5[%c0_3, %c0_4] : memref<1x128xf32, #tpu.memory_space<vmem>>, vector<1x128xf32>
    %4 = vector.broadcast %3 : vector<1x128xf32> to vector<64x128xf32>
    %5 = arith.addf %2, %4 : vector<64x128xf32>
    %c0_5 = arith.constant 0 : index
    %c0_6 = arith.constant 0 : index
    %6 = vector.load %arg10[%c0_5, %c0_6] : memref<64x128xf32, #tpu.memory_space<vmem>>, vector<64x128xf32>
    tpu.vector_store %arg10[%c0_5, %c0_6], %5 {strides = array<i32>} : memref<64x128xf32, #tpu.memory_space<vmem>>, vector<64x128xf32>,
    %c0_7 = arith.constant 0 : index
    %c0_8 = arith.constant 0 : index
    %7 = vector.load %arg2[%c0_7, %c0_8] : memref<8x128xf32, #tpu.memory_space<vmem>>, vector<8x128xf32>
    %c0_i32 = arith.constant 0 : i32
    %c8_i32 = arith.constant 8 : i32
    %8 = arith.muli %c0_i32, %c8_i32 : i32
    %9 = tpu.assume_multiple %8, 8 : i32
    %10 = arith.index_cast %9 : i32 to index
    %c0_9 = arith.constant 0 : index
    %11 = vector.load %arg10[%10, %c0_9] : memref<64x128xf32, #tpu.memory_space<vmem>>, vector<8x128xf32>
    %c0_10 = arith.constant 0 : index
    %c0_11 = arith.constant 0 : index
    %12 = vector.load %arg4[%c0_10, %c0_11] : memref<128x128xf32, #tpu.memory_space<vmem>>, vector<128x128xf32>
    %cst_12 = arith.constant dense<0.000000e+00> : vector<8x128xf32>
    %13 = tpu.matmul %7, %12, %cst_12 {dimension_numbers = #tpu.dot_dimension_numbers<[1], [0], [0], [1], [0, 0, 1, 1], [], []>} : vector<8x128xf32>, vector<128x128xf32>, vector<8x128xf32> -> vector<8x128xf32>
    %14 = arith.addf %11, %13 : vector<8x128xf32>
    %15 = math.tanh %14 : vector<8x128xf32>
    %16 = arith.index_cast %9 : i32 to index
    %c0_13 = arith.constant 0 : index
    %17 = vector.load %arg10[%16, %c0_13] : memref<64x128xf32, #tpu.memory_space<vmem>>, vector<8x128xf32>
    tpu.vector_store %arg10[%16, %c0_13], %15 {strides = array<i32>} : memref<64x128xf32, #tpu.memory_space<vmem>>, vector<8x128xf32>,
    %c1_i32 = arith.constant 1 : i32
    %c8_i32_14 = arith.constant 8 : i32
    %18 = arith.muli %c1_i32, %c8_i32_14 : i32
    %19 = tpu.assume_multiple %18, 8 : i32
    %20 = arith.index_cast %19 : i32 to index
    %c0_15 = arith.constant 0 : index
    %21 = vector.load %arg10[%20, %c0_15] : memref<64x128xf32, #tpu.memory_space<vmem>>, vector<8x128xf32>
    %c0_16 = arith.constant 0 : index
    %c0_17 = arith.constant 0 : index
    %22 = vector.load %arg4[%c0_16, %c0_17] : memref<128x128xf32, #tpu.memory_space<vmem>>, vector<128x128xf32>
    %cst_18 = arith.constant dense<0.000000e+00> : vector<8x128xf32>
    %23 = tpu.matmul %15, %22, %cst_18 {dimension_numbers = #tpu.dot_dimension_numbers<[1], [0], [0], [1], [0, 0, 1, 1], [], []>} : vector<8x128xf32>, vector<128x128xf32>, vector<8x128xf32> -> vector<8x128xf32>
    %24 = arith.addf %21, %23 : vector<8x128xf32>
    %25 = math.tanh %24 : vector<8x128xf32>
    %26 = arith.index_cast %19 : i32 to index
    %c0_19 = arith.constant 0 : index
    %27 = vector.load %arg10[%26, %c0_19] : memref<64x128xf32, #tpu.memory_space<vmem>>, vector<8x128xf32>
    tpu.vector_store %arg10[%26, %c0_19], %25 {strides = array<i32>} : memref<64x128xf32, #tpu.memory_space<vmem>>, vector<8x128xf32>,
    %c2_i32 = arith.constant 2 : i32
    %c8_i32_20 = arith.constant 8 : i32
    %28 = arith.muli %c2_i32, %c8_i32_20 : i32
    %29 = tpu.assume_multiple %28, 8 : i32
    %30 = arith.index_cast %29 : i32 to index
    %c0_21 = arith.constant 0 : index
    %31 = vector.load %arg10[%30, %c0_21] : memref<64x128xf32, #tpu.memory_space<vmem>>, vector<8x128xf32>
    %c0_22 = arith.constant 0 : index
    %c0_23 = arith.constant 0 : index
    %32 = vector.load %arg4[%c0_22, %c0_23] : memref<128x128xf32, #tpu.memory_space<vmem>>, vector<128x128xf32>
    %cst_24 = arith.constant dense<0.000000e+00> : vector<8x128xf32>
    %33 = tpu.matmul %25, %32, %cst_24 {dimension_numbers = #tpu.dot_dimension_numbers<[1], [0], [0], [1], [0, 0, 1, 1], [], []>} : vector<8x128xf32>, vector<128x128xf32>, vector<8x128xf32> -> vector<8x128xf32>
    %34 = arith.addf %31, %33 : vector<8x128xf32>
    %35 = math.tanh %34 : vector<8x128xf32>
    %36 = arith.index_cast %29 : i32 to index
    %c0_25 = arith.constant 0 : index
    %37 = vector.load %arg10[%36, %c0_25] : memref<64x128xf32, #tpu.memory_space<vmem>>, vector<8x128xf32>
    tpu.vector_store %arg10[%36, %c0_25], %35 {strides = array<i32>} : memref<64x128xf32, #tpu.memory_space<vmem>>, vector<8x128xf32>,
    %c3_i32 = arith.constant 3 : i32
    %c8_i32_26 = arith.constant 8 : i32
    %38 = arith.muli %c3_i32, %c8_i32_26 : i32
    %39 = tpu.assume_multiple %38, 8 : i32
    %40 = arith.index_cast %39 : i32 to index
    %c0_27 = arith.constant 0 : index
    %41 = vector.load %arg10[%40, %c0_27] : memref<64x128xf32, #tpu.memory_space<vmem>>, vector<8x128xf32>
    %c0_28 = arith.constant 0 : index
    %c0_29 = arith.constant 0 : index
    %42 = vector.load %arg4[%c0_28, %c0_29] : memref<128x128xf32, #tpu.memory_space<vmem>>, vector<128x128xf32>
    %cst_30 = arith.constant dense<0.000000e+00> : vector<8x128xf32>
    %43 = tpu.matmul %35, %42, %cst_30 {dimension_numbers = #tpu.dot_dimension_numbers<[1], [0], [0], [1], [0, 0, 1, 1], [], []>} : vector<8x128xf32>, vector<128x128xf32>, vector<8x128xf32> -> vector<8x128xf32>
    %44 = arith.addf %41, %43 : vector<8x128xf32>
    %45 = math.tanh %44 : vector<8x128xf32>
    %46 = arith.index_cast %39 : i32 to index
    %c0_31 = arith.constant 0 : index
    %47 = vector.load %arg10[%46, %c0_31] : memref<64x128xf32, #tpu.memory_space<vmem>>, vector<8x128xf32>
    tpu.vector_store %arg10[%46, %c0_31], %45 {strides = array<i32>} : memref<64x128xf32, #tpu.memory_space<vmem>>, vector<8x128xf32>,
    %c4_i32 = arith.constant 4 : i32
    %c8_i32_32 = arith.constant 8 : i32
    %48 = arith.muli %c4_i32, %c8_i32_32 : i32
    %49 = tpu.assume_multiple %48, 8 : i32
    %50 = arith.index_cast %49 : i32 to index
    %c0_33 = arith.constant 0 : index
    %51 = vector.load %arg10[%50, %c0_33] : memref<64x128xf32, #tpu.memory_space<vmem>>, vector<8x128xf32>
    %c0_34 = arith.constant 0 : index
    %c0_35 = arith.constant 0 : index
    %52 = vector.load %arg4[%c0_34, %c0_35] : memref<128x128xf32, #tpu.memory_space<vmem>>, vector<128x128xf32>
    %cst_36 = arith.constant dense<0.000000e+00> : vector<8x128xf32>
    %53 = tpu.matmul %45, %52, %cst_36 {dimension_numbers = #tpu.dot_dimension_numbers<[1], [0], [0], [1], [0, 0, 1, 1], [], []>} : vector<8x128xf32>, vector<128x128xf32>, vector<8x128xf32> -> vector<8x128xf32>
    %54 = arith.addf %51, %53 : vector<8x128xf32>
    %55 = math.tanh %54 : vector<8x128xf32>
    %56 = arith.index_cast %49 : i32 to index
    %c0_37 = arith.constant 0 : index
    %57 = vector.load %arg10[%56, %c0_37] : memref<64x128xf32, #tpu.memory_space<vmem>>, vector<8x128xf32>
    tpu.vector_store %arg10[%56, %c0_37], %55 {strides = array<i32>} : memref<64x128xf32, #tpu.memory_space<vmem>>, vector<8x128xf32>,
    %c5_i32 = arith.constant 5 : i32
    %c8_i32_38 = arith.constant 8 : i32
    %58 = arith.muli %c5_i32, %c8_i32_38 : i32
    %59 = tpu.assume_multiple %58, 8 : i32
    %60 = arith.index_cast %59 : i32 to index
    %c0_39 = arith.constant 0 : index
    %61 = vector.load %arg10[%60, %c0_39] : memref<64x128xf32, #tpu.memory_space<vmem>>, vector<8x128xf32>
    %c0_40 = arith.constant 0 : index
    %c0_41 = arith.constant 0 : index
    %62 = vector.load %arg4[%c0_40, %c0_41] : memref<128x128xf32, #tpu.memory_space<vmem>>, vector<128x128xf32>
    %cst_42 = arith.constant dense<0.000000e+00> : vector<8x128xf32>
    %63 = tpu.matmul %55, %62, %cst_42 {dimension_numbers = #tpu.dot_dimension_numbers<[1], [0], [0], [1], [0, 0, 1, 1], [], []>} : vector<8x128xf32>, vector<128x128xf32>, vector<8x128xf32> -> vector<8x128xf32>
    %64 = arith.addf %61, %63 : vector<8x128xf32>
    %65 = math.tanh %64 : vector<8x128xf32>
    %66 = arith.index_cast %59 : i32 to index
    %c0_43 = arith.constant 0 : index
    %67 = vector.load %arg10[%66, %c0_43] : memref<64x128xf32, #tpu.memory_space<vmem>>, vector<8x128xf32>
    tpu.vector_store %arg10[%66, %c0_43], %65 {strides = array<i32>} : memref<64x128xf32, #tpu.memory_space<vmem>>, vector<8x128xf32>,
    %c6_i32 = arith.constant 6 : i32
    %c8_i32_44 = arith.constant 8 : i32
    %68 = arith.muli %c6_i32, %c8_i32_44 : i32
    %69 = tpu.assume_multiple %68, 8 : i32
    %70 = arith.index_cast %69 : i32 to index
    %c0_45 = arith.constant 0 : index
    %71 = vector.load %arg10[%70, %c0_45] : memref<64x128xf32, #tpu.memory_space<vmem>>, vector<8x128xf32>
    %c0_46 = arith.constant 0 : index
    %c0_47 = arith.constant 0 : index
    %72 = vector.load %arg4[%c0_46, %c0_47] : memref<128x128xf32, #tpu.memory_space<vmem>>, vector<128x128xf32>
    %cst_48 = arith.constant dense<0.000000e+00> : vector<8x128xf32>
    %73 = tpu.matmul %65, %72, %cst_48 {dimension_numbers = #tpu.dot_dimension_numbers<[1], [0], [0], [1], [0, 0, 1, 1], [], []>} : vector<8x128xf32>, vector<128x128xf32>, vector<8x128xf32> -> vector<8x128xf32>
    %74 = arith.addf %71, %73 : vector<8x128xf32>
    %75 = math.tanh %74 : vector<8x128xf32>
    %76 = arith.index_cast %69 : i32 to index
    %c0_49 = arith.constant 0 : index
    %77 = vector.load %arg10[%76, %c0_49] : memref<64x128xf32, #tpu.memory_space<vmem>>, vector<8x128xf32>
    tpu.vector_store %arg10[%76, %c0_49], %75 {strides = array<i32>} : memref<64x128xf32, #tpu.memory_space<vmem>>, vector<8x128xf32>,
    %c7_i32 = arith.constant 7 : i32
    %c8_i32_50 = arith.constant 8 : i32
    %78 = arith.muli %c7_i32, %c8_i32_50 : i32
    %79 = tpu.assume_multiple %78, 8 : i32
    %80 = arith.index_cast %79 : i32 to index
    %c0_51 = arith.constant 0 : index
    %81 = vector.load %arg10[%80, %c0_51] : memref<64x128xf32, #tpu.memory_space<vmem>>, vector<8x128xf32>
    %c0_52 = arith.constant 0 : index
    %c0_53 = arith.constant 0 : index
    %82 = vector.load %arg4[%c0_52, %c0_53] : memref<128x128xf32, #tpu.memory_space<vmem>>, vector<128x128xf32>
    %cst_54 = arith.constant dense<0.000000e+00> : vector<8x128xf32>
    %83 = tpu.matmul %75, %82, %cst_54 {dimension_numbers = #tpu.dot_dimension_numbers<[1], [0], [0], [1], [0, 0, 1, 1], [], []>} : vector<8x128xf32>, vector<128x128xf32>, vector<8x128xf32> -> vector<8x128xf32>
    %84 = arith.addf %81, %83 : vector<8x128xf32>
    %85 = math.tanh %84 : vector<8x128xf32>
    %86 = arith.index_cast %79 : i32 to index
    %c0_55 = arith.constant 0 : index
    %87 = vector.load %arg10[%86, %c0_55] : memref<64x128xf32, #tpu.memory_space<vmem>>, vector<8x128xf32>
    tpu.vector_store %arg10[%86, %c0_55], %85 {strides = array<i32>} : memref<64x128xf32, #tpu.memory_space<vmem>>, vector<8x128xf32>,
    %c8_i32_56 = arith.constant 8 : i32
    %c0_57 = arith.constant 0 : index
    %c0_58 = arith.constant 0 : index
    %88 = vector.load %arg10[%c0_57, %c0_58] : memref<64x128xf32, #tpu.memory_space<vmem>>, vector<64x128xf32>
    %c0_59 = arith.constant 0 : index
    %c0_60 = arith.constant 0 : index
    %89 = vector.load %arg6[%c0_59, %c0_60] : memref<128x128xf32, #tpu.memory_space<vmem>>, vector<128x128xf32>
    %cst_61 = arith.constant dense<0.000000e+00> : vector<64x128xf32>
    %90 = tpu.matmul %88, %89, %cst_61 {dimension_numbers = #tpu.dot_dimension_numbers<[1], [0], [0], [1], [0, 0, 1, 1], [], []>} : vector<64x128xf32>, vector<128x128xf32>, vector<64x128xf32> -> vector<64x128xf32>
    %c0_62 = arith.constant 0 : index
    %c0_63 = arith.constant 0 : index
    %91 = vector.load %arg7[%c0_62, %c0_63] : memref<1x128xf32, #tpu.memory_space<vmem>>, vector<1x128xf32>
    %92 = vector.broadcast %91 : vector<1x128xf32> to vector<64x128xf32>
    %93 = arith.addf %90, %92 : vector<64x128xf32>
    %c0_64 = arith.constant 0 : index
    %c0_65 = arith.constant 0 : index
    %94 = vector.load %arg8[%c0_64, %c0_65] : memref<64x128xf32, #tpu.memory_space<vmem>>, vector<64x128xf32>
    tpu.vector_store %arg8[%c0_64, %c0_65], %93 {strides = array<i32>} : memref<64x128xf32, #tpu.memory_space<vmem>>, vector<64x128xf32>,
    %c0_66 = arith.constant 0 : index
    %c0_67 = arith.constant 0 : index
    %95 = vector.load %arg9[%c0_66, %c0_67] : memref<8x128xf32, #tpu.memory_space<vmem>>, vector<8x128xf32>
    tpu.vector_store %arg9[%c0_66, %c0_67], %85 {strides = array<i32>} : memref<8x128xf32, #tpu.memory_space<vmem>>, vector<8x128xf32>,
    return
  }
  func.func @transform_0(%arg0: i32) -> (i32, i32) {
    %c0_i32 = arith.constant 0 : i32
    %c0_i32_0 = arith.constant 0 : i32
    %c0_i32_1 = arith.constant 0 : i32
    return %c0_i32, %c0_i32_0 : i32, i32
  }
  func.func @transform_1(%arg0: i32) -> (i32, i32) {
    %c0_i32 = arith.constant 0 : i32
    %c0_i32_0 = arith.constant 0 : i32
    %c0_i32_1 = arith.constant 0 : i32
    return %c0_i32, %c0_i32_0 : i32, i32
  }
  func.func @transform_2(%arg0: i32) -> (i32, i32) {
    %c0_i32 = arith.constant 0 : i32
    %c0_i32_0 = arith.constant 0 : i32
    %c0_i32_1 = arith.constant 0 : i32
    return %c0_i32, %c0_i32_0 : i32, i32
  }
  func.func @transform_3(%arg0: i32) -> (i32, i32) {
    %c0_i32 = arith.constant 0 : i32
    %c0_i32_0 = arith.constant 0 : i32
    %c0_i32_1 = arith.constant 0 : i32
    return %c0_i32, %c0_i32_0 : i32, i32
  }
  func.func @transform_4(%arg0: i32) -> (i32, i32) {
    %c0_i32 = arith.constant 0 : i32
    %c0_i32_0 = arith.constant 0 : i32
    %c0_i32_1 = arith.constant 0 : i32
    return %c0_i32, %c0_i32_0 : i32, i32
  }
  func.func @transform_5(%arg0: i32) -> (i32, i32) {
    %c0_i32 = arith.constant 0 : i32
    %c0_i32_0 = arith.constant 0 : i32
    %c0_i32_1 = arith.constant 0 : i32
    return %c0_i32, %c0_i32_0 : i32, i32
  }
  func.func @transform_6(%arg0: i32) -> (i32, i32) {
    %c0_i32 = arith.constant 0 : i32
    %c0_i32_0 = arith.constant 0 : i32
    %c0_i32_1 = arith.constant 0 : i32
    return %c0_i32, %c0_i32_0 : i32, i32
  }
  func.func @transform_7(%arg0: i32) -> (i32, i32) {
    %c0_i32 = arith.constant 0 : i32
    %c0_i32_0 = arith.constant 0 : i32
    %c0_i32_1 = arith.constant 0 : i32
    return %c0_i32, %c0_i32_0 : i32, i32
  }
  func.func @transform_8(%arg0: i32) -> (i32, i32) {
    %c0_i32 = arith.constant 0 : i32
    %c0_i32_0 = arith.constant 0 : i32
    %c0_i32_1 = arith.constant 0 : i32
    return %c0_i32, %c0_i32_0 : i32, i32
  }
}

</mosaic_0001>

<llo_original>
// kernel: tpu_custom_call.1
$region0: #{tpu_custom_call.1}
  #allocation0 [shape = 'u32[]', space=smem, size = 0x4, offset = 0x4, fixed_abs, tag = 'smem constant byte address 0x4 - core index']
  #allocation1 [shape = 'u32[144,128]{1,0:T(1,128)}', space=vmem, size = 0x12000, scoped, tag = 'internal scratch']
  #allocation2 [shape = 'f32[64,128]{1,0:T(8,128)}', space=vmem, size = 0x8000, scoped, tag = 'scratch operand']
  %s0 = inlined_call_operand.vmem [shape: f32[64,16], index: 0, kind: input, shape index: {}]
  %s1 = inlined_call_operand.vmem [shape: f32[8,128], index: 1, kind: input, shape index: {}]
  %s2 = inlined_call_operand.vmem [shape: f32[16,128], index: 2, kind: input, shape index: {}]
  %s3 = inlined_call_operand.hbm [shape: f32[128,128], index: 3, kind: input, shape index: {}]
  %s4 = inlined_call_operand.vmem [shape: f32[1,128], index: 4, kind: input, shape index: {}]
  %s5 = inlined_call_operand.hbm [shape: f32[128,128], index: 5, kind: input, shape index: {}]
  %s6 = inlined_call_operand.vmem [shape: f32[1,128], index: 6, kind: input, shape index: {}]
  %s7 = inlined_call_operand.hbm [shape: f32[64,128], index: 7, kind: output, shape index: {0}]
  %s8 = inlined_call_operand.hbm [shape: f32[8,128], index: 8, kind: output, shape index: {1}]
  %9 = xla_tuple %s7, %s8
  %s10 = sld [smem:[#allocation0]]
  $region54: #{tpu_custom_call.1} parent=0
    _
  %s12 = ssub.s32 1, %s10
  %s13 = scalar_select 0, %s12, %s10
  $region1: #{tpu_custom_call.1} parent=0
    #allocation3 [shape = 'u8[65536]{0}', space=vmem, size = 0x10000, scoped, tag = 'input window, operand 3, single buffered']
    #allocation4 [shape = 's32[1]{0}', space=sflag, size = 0x4, scoped, tag = 'scoped memory for tpu_custom_call.1']
    #allocation5 [shape = 's32[1]{0}', space=sflag, size = 0x4, scoped, tag = 'scoped memory for tpu_custom_call.1']
    #allocation6 [shape = 'u8[65536]{0}', space=vmem, size = 0x10000, scoped, tag = 'input window, operand 5, single buffered']
    #allocation7 [shape = 's32[1]{0}', space=sflag, size = 0x4, scoped, tag = 'scoped memory for tpu_custom_call.1']
    #allocation8 [shape = 'u8[32768]{0}', space=vmem, size = 0x8000, scoped, tag = 'output window, operand 0, single buffered']
    #allocation9 [shape = 'u8[4096]{0}', space=vmem, size = 0x1000, scoped, tag = 'output window, operand 1, single buffered']
    #allocation10 [shape = 's32[1]{0}', space=sflag, size = 0x4, scoped, tag = 'scoped memory for tpu_custom_call.1']
    %14 = vsyncpa [#allocation4], 0
    %15 = vsyncpa [#allocation7], 0
    %16 = vsyncpa [#allocation5], 0
    %17 = vsyncpa [#allocation10], 0
    // Predicated region
    $region2: #{tpu_custom_call.1} parent=1 // pred_check
      _
    $region3: #{tpu_custom_call.1} parent=1 // pred_check_branch
      %19 = sbr.rel (0) target = $region5
    $region4: #{tpu_custom_call.1} parent=1 // pred_region
      _
    $region5: #{tpu_custom_call.1} parent=1 // pred_fallthru
      _
    // Predicated region
    $region6: #{tpu_custom_call.1} parent=1 // pred_check
      _
    $region7: #{tpu_custom_call.1} parent=1 // pred_check_branch
      %21 = sbr.rel (0) target = $region9
    $region8: #{tpu_custom_call.1} parent=1 // pred_region
      _
    $region9: #{tpu_custom_call.1} parent=1 // pred_fallthru
      _
    // Predicated region
    $region10: #{tpu_custom_call.1} parent=1 // pred_check
      _
    $region11: #{tpu_custom_call.1} parent=1 // pred_check_branch
      %23 = sbr.rel (0) target = $region13
    $region12: #{tpu_custom_call.1} parent=1 // pred_region
      _
    $region13: #{tpu_custom_call.1} parent=1 // pred_fallthru
      _
    // Predicated region
    $region14: #{tpu_custom_call.1} parent=1 // pred_check
      _
    $region15: #{tpu_custom_call.1} parent=1 // pred_check_branch
      %25 = sbr.rel (0) target = $region17
    $region16: #{tpu_custom_call.1} parent=1 // pred_region
      %s27 = ssub.s32 2048, 2048
      %28 = vsyncadd [#allocation4], %s27
      %s29 = sshll.u32 [#allocation3], 4
      %s30 = int_to_ptr.vmem [resolvable:$true] %s29
      %35 = dma.hbm_to_vmem [thread:$0]  %s3, 2048, %s30, [#allocation4], 128, 128, 8
    $region17: #{tpu_custom_call.1} parent=1 // pred_fallthru
      _
    // Predicated region
    $region18: #{tpu_custom_call.1} parent=1 // pred_check
      _
    $region19: #{tpu_custom_call.1} parent=1 // pred_check_branch
      %37 = sbr.rel (0) target = $region21
    $region20: #{tpu_custom_call.1} parent=1 // pred_region
      _
    $region21: #{tpu_custom_call.1} parent=1 // pred_fallthru
      _
    // Predicated region
    $region22: #{tpu_custom_call.1} parent=1 // pred_check
      _
    $region23: #{tpu_custom_call.1} parent=1 // pred_check_branch
      %39 = sbr.rel (0) target = $region25
    $region24: #{tpu_custom_call.1} parent=1 // pred_region
      %s41 = ssub.s32 2048, 2048
      %42 = vsyncadd [#allocation7], %s41
      %s43 = sshll.u32 [#allocation6], 4
      %s44 = int_to_ptr.vmem [resolvable:$true] %s43
      %49 = dma.hbm_to_vmem [thread:$0]  %s5, 2048, %s44, [#allocation7], 128, 128, 8
    $region25: #{tpu_custom_call.1} parent=1 // pred_fallthru
      _
    // Predicated region
    $region26: #{tpu_custom_call.1} parent=1 // pred_check
      _
    $region27: #{tpu_custom_call.1} parent=1 // pred_check_branch
      %51 = sbr.rel (0) target = $region29
    $region28: #{tpu_custom_call.1} parent=1 // pred_region
      _
    $region29: #{tpu_custom_call.1} parent=1 // pred_fallthru
      _
    // Predicated region
    $region30: #{tpu_custom_call.1} parent=1 // pred_check
      _
    $region31: #{tpu_custom_call.1} parent=1 // pred_check_branch
      %53 = sbr.rel (0) target = $region33
    $region32: #{tpu_custom_call.1} parent=1 // pred_region
      %54 = dma.done [#allocation4], 2048
    $region33: #{tpu_custom_call.1} parent=1 // pred_fallthru
      _
    // Predicated region
    $region34: #{tpu_custom_call.1} parent=1 // pred_check
      _
    $region35: #{tpu_custom_call.1} parent=1 // pred_check_branch
      %56 = sbr.rel (0) target = $region37
    $region36: #{tpu_custom_call.1} parent=1 // pred_region
      %57 = dma.done [#allocation7], 2048
    $region37: #{tpu_custom_call.1} parent=1 // pred_fallthru
      _
    %v58 = vld [vmem:[%s0] sm:$0xff]
    %v59 = vld [vmem:[%s0 + $0x8] sm:$0xff]
    %v60 = vld [vmem:[%s0 + $0x10] sm:$0xff]
    %v61 = vld [vmem:[%s0 + $0x18] sm:$0xff]
    %v62 = vld [vmem:[%s0 + $0x20] sm:$0xff]
    %v63 = vld [vmem:[%s0 + $0x28] sm:$0xff]
    %v64 = vld [vmem:[%s0 + $0x30] sm:$0xff]
    %v65 = vld [vmem:[%s0 + $0x38] sm:$0xff]
    %v66 = vld [vmem:[%s2] sm:$0xff]
    %v67 = vld [vmem:[%s2 + $0x8] sm:$0xff]
    %v68 = vld [vmem:[%s4] sm:$0x1]
    %v70 = vlaneseq
    %v71 = vshrl.u32 %v70, 7
    %v72 = vsub.s32 0, %v71
    %v73 = vrot.slane %v68, %v72
    %vm75 = vcmask 130048
    %v77 = vsel %vm75, %v58, 0
    %v80 = vsel %vm75, %v59, 0
    %v83 = vsel %vm75, %v60, 0
    %v86 = vsel %vm75, %v61, 0
    %v89 = vsel %vm75, %v62, 0
    %v92 = vsel %vm75, %v63, 0
    %v95 = vsel %vm75, %v64, 0
    %v98 = vsel %vm75, %v65, 0
    %100 = vmatprep.subr.mxu0 0.0
    %101 = vmatpush1.msra.mxu0 %v66
    %102 = vmatprep.subr.mxu0 0.0
    %103 = vmatpush1.msra.mxu0 %v67
    %104 = vmatprep.subr.mxu0 0.0
    %105 = vmatpush1.msra.mxu0 0.0
    %106 = vmatprep.subr.mxu0 0.0
    %107 = vmatpush1.msra.mxu0 0.0
    %108 = vmatprep.subr.mxu0 0.0
    %109 = vmatpush1.msra.mxu0 0.0
    %110 = vmatprep.subr.mxu0 0.0
    %111 = vmatpush1.msra.mxu0 0.0
    %112 = vmatprep.subr.mxu0 0.0
    %113 = vmatpush1.msra.mxu0 0.0
    %114 = vmatprep.subr.mxu0 0.0
    %115 = vmatpush1.msra.mxu0 0.0
    %116 = vmatprep.subr.mxu0 0.0
    %117 = vmatpush1.msra.mxu0 0.0
    %118 = vmatprep.subr.mxu0 0.0
    %119 = vmatpush1.msra.mxu0 0.0
    %120 = vmatprep.subr.mxu0 0.0
    %121 = vmatpush1.msra.mxu0 0.0
    %122 = vmatprep.subr.mxu0 0.0
    %123 = vmatpush1.msra.mxu0 0.0
    %124 = vmatprep.subr.mxu0 0.0
    %125 = vmatpush1.msra.mxu0 0.0
    %126 = vmatprep.subr.mxu0 0.0
    %127 = vmatpush1.msra.mxu0 0.0
    %128 = vmatprep.subr.mxu0 0.0
    %129 = vmatpush1.msra.mxu0 0.0
    %130 = vmatprep.subr.mxu0 0.0
    %131 = vmatpush1.msra.mxu0 0.0
    %132 = vmatprep.subr.mxu0 0.0
    %133 = vmatpush1.msra.mxu0 0.0
    %134 = vmatprep.subr.mxu0 0.0
    %135 = vmatpush1.msra.mxu0 0.0
    %136 = vmatprep.subr.mxu0 0.0
    %137 = vmatpush1.msra.mxu0 0.0
    %138 = vmatprep.subr.mxu0 0.0
    %139 = vmatpush1.msra.mxu0 0.0
    %140 = vmatprep.subr.mxu0 0.0
    %141 = vmatpush1.msra.mxu0 0.0
    %142 = vmatprep.subr.mxu0 0.0
    %143 = vmatpush1.msra.mxu0 0.0
    %144 = vmatprep.subr.mxu0 0.0
    %145 = vmatpush1.msra.mxu0 0.0
    %146 = vmatprep.subr.mxu0 0.0
    %147 = vmatpush1.msra.mxu0 0.0
    %148 = vmatprep.subr.mxu0 0.0
    %149 = vmatpush1.msra.mxu0 0.0
    %150 = vmatprep.subr.mxu0 0.0
    %151 = vmatpush1.msra.mxu0 0.0
    %152 = vmatprep.subr.mxu0 0.0
    %153 = vmatpush1.msra.mxu0 0.0
    %154 = vmatprep.subr.mxu0 0.0
    %155 = vmatpush1.msra.mxu0 0.0
    %156 = vmatprep.subr.mxu0 0.0
    %157 = vmatpush1.msra.mxu0 0.0
    %158 = vmatprep.subr.mxu0 0.0
    %159 = vmatpush1.msra.mxu0 0.0
    %160 = vmatprep.subr.mxu0 0.0
    %161 = vmatpush1.msra.mxu0 0.0
    %162 = vmatprep.subr.mxu0 0.0
    %163 = vmatpush1.msra.mxu0 0.0
    %164 = vmatprep.mubr.f32.mxu0 0.0
    %165 = vmatmul.mubr.f32.gmra.mrb[0].mxu0 %v77
    %v166 = vpop.f32.mrb[0].mxu0
    %v167 = vadd.f32 %v73, %v166
    %v168 = vpop.f32.mrb[0].mxu0
    %169 = vmatprep.mubr.f32.mxu0 0.0
    %170 = vmatmul.mubr.f32.gmra.mrb[0].mxu0 %v80
    %v171 = vpop.f32.mrb[0].mxu0
    %v172 = vadd.f32 %v73, %v171
    %v173 = vpop.f32.mrb[0].mxu0
    %174 = vmatprep.mubr.f32.mxu0 0.0
    %175 = vmatmul.mubr.f32.gmra.mrb[0].mxu0 %v83
    %v176 = vpop.f32.mrb[0].mxu0
    %v177 = vadd.f32 %v73, %v176
    %v178 = vpop.f32.mrb[0].mxu0
    %179 = vmatprep.mubr.f32.mxu0 0.0
    %180 = vmatmul.mubr.f32.gmra.mrb[0].mxu0 %v86
    %v181 = vpop.f32.mrb[0].mxu0
    %v182 = vadd.f32 %v73, %v181
    %v183 = vpop.f32.mrb[0].mxu0
    %184 = vmatprep.mubr.f32.mxu0 0.0
    %185 = vmatmul.mubr.f32.gmra.mrb[0].mxu0 %v89
    %v186 = vpop.f32.mrb[0].mxu0
    %v187 = vadd.f32 %v73, %v186
    %v188 = vpop.f32.mrb[0].mxu0
    %189 = vmatprep.mubr.f32.mxu0 0.0
    %190 = vmatmul.mubr.f32.gmra.mrb[0].mxu0 %v92
    %v191 = vpop.f32.mrb[0].mxu0
    %v192 = vadd.f32 %v73, %v191
    %v193 = vpop.f32.mrb[0].mxu0
    %194 = vmatprep.mubr.f32.mxu0 0.0
    %195 = vmatmul.mubr.f32.gmra.mrb[0].mxu0 %v95
    %v196 = vpop.f32.mrb[0].mxu0
    %v197 = vadd.f32 %v73, %v196
    %v198 = vpop.f32.mrb[0].mxu0
    %199 = vmatprep.mubr.f32.mxu0 0.0
    %200 = vmatmul.mubr.f32.gmra.mrb[0].mxu0 %v98
    %v201 = vpop.f32.mrb[0].mxu0
    %v202 = vadd.f32 %v73, %v201
    %v203 = vpop.f32.mrb[0].mxu0
    %204 = vdwg.mxu0
    %205 = vst [vmem:[#allocation2] sm:$0xff] %v167
    %206 = vst [vmem:[#allocation2 + $0x8] sm:$0xff] %v172
    %207 = vst [vmem:[#allocation2 + $0x10] sm:$0xff] %v177
    %208 = vst [vmem:[#allocation2 + $0x18] sm:$0xff] %v182
    %209 = vst [vmem:[#allocation2 + $0x20] sm:$0xff] %v187
    %210 = vst [vmem:[#allocation2 + $0x28] sm:$0xff] %v192
    %211 = vst [vmem:[#allocation2 + $0x30] sm:$0xff] %v197
    %212 = vst [vmem:[#allocation2 + $0x38] sm:$0xff] %v202
    %v213 = vld [vmem:[%s1] sm:$0xff]
    %v214 = vld [vmem:[#allocation2] sm:$0xff]
    %v215 = vld [vmem:[#allocation3] sm:$0xff]
    %v216 = vld [vmem:[#allocation3 + $0x8] sm:$0xff]
    %v217 = vld [vmem:[#allocation3 + $0x10] sm:$0xff]
    %v218 = vld [vmem:[#allocation3 + $0x18] sm:$0xff]
    %v219 = vld [vmem:[#allocation3 + $0x20] sm:$0xff]
    %v220 = vld [vmem:[#allocation3 + $0x28] sm:$0xff]
    %v221 = vld [vmem:[#allocation3 + $0x30] sm:$0xff]
    %v222 = vld [vmem:[#allocation3 + $0x38] sm:$0xff]
    %v223 = vld [vmem:[#allocation3 + $0x40] sm:$0xff]
    %v224 = vld [vmem:[#allocation3 + $0x48] sm:$0xff]
    %v225 = vld [vmem:[#allocation3 + $0x50] sm:$0xff]
    %v226 = vld [vmem:[#allocation3 + $0x58] sm:$0xff]
    %v227 = vld [vmem:[#allocation3 + $0x60] sm:$0xff]
    %v228 = vld [vmem:[#allocation3 + $0x68] sm:$0xff]
    %v229 = vld [vmem:[#allocation3 + $0x70] sm:$0xff]
    %v230 = vld [vmem:[#allocation3 + $0x78] sm:$0xff]
    %231 = vmatprep.subr.mxu0 0.0
    %232 = vmatpush1.msra.mxu0 %v215
    %233 = vmatprep.subr.mxu0 0.0
    %234 = vmatpush1.msra.mxu0 %v216
    %235 = vmatprep.subr.mxu0 0.0
    %236 = vmatpush1.msra.mxu0 %v217
    %237 = vmatprep.subr.mxu0 0.0
    %238 = vmatpush1.msra.mxu0 %v218
    %239 = vmatprep.subr.mxu0 0.0
    %240 = vmatpush1.msra.mxu0 %v219
    %241 = vmatprep.subr.mxu0 0.0
    %242 = vmatpush1.msra.mxu0 %v220
    %243 = vmatprep.subr.mxu0 0.0
    %244 = vmatpush1.msra.mxu0 %v221
    %245 = vmatprep.subr.mxu0 0.0
    %246 = vmatpush1.msra.mxu0 %v222
    %247 = vmatprep.subr.mxu0 0.0
    %248 = vmatpush1.msra.mxu0 %v223
    %249 = vmatprep.subr.mxu0 0.0
    %250 = vmatpush1.msra.mxu0 %v224
    %251 = vmatprep.subr.mxu0 0.0
    %252 = vmatpush1.msra.mxu0 %v225
    %253 = vmatprep.subr.mxu0 0.0
    %254 = vmatpush1.msra.mxu0 %v226
    %255 = vmatprep.subr.mxu0 0.0
    %256 = vmatpush1.msra.mxu0 %v227
    %257 = vmatprep.subr.mxu0 0.0
    %258 = vmatpush1.msra.mxu0 %v228
    %259 = vmatprep.subr.mxu0 0.0
    %260 = vmatpush1.msra.mxu0 %v229
    %261 = vmatprep.subr.mxu0 0.0
    %262 = vmatpush1.msra.mxu0 %v230
    %263 = vmatprep.subr.mxu0 0.0
    %264 = vmatpush1.msra.mxu0 0.0
    %265 = vmatprep.subr.mxu0 0.0
    %266 = vmatpush1.msra.mxu0 0.0
    %267 = vmatprep.subr.mxu0 0.0
    %268 = vmatpush1.msra.mxu0 0.0
    %269 = vmatprep.subr.mxu0 0.0
    %270 = vmatpush1.msra.mxu0 0.0
    %271 = vmatprep.subr.mxu0 0.0
    %272 = vmatpush1.msra.mxu0 0.0
    %273 = vmatprep.subr.mxu0 0.0
    %274 = vmatpush1.msra.mxu0 0.0
    %275 = vmatprep.subr.mxu0 0.0
    %276 = vmatpush1.msra.mxu0 0.0
    %277 = vmatprep.subr.mxu0 0.0
    %278 = vmatpush1.msra.mxu0 0.0
    %279 = vmatprep.subr.mxu0 0.0
    %280 = vmatpush1.msra.mxu0 0.0
    %281 = vmatprep.subr.mxu0 0.0
    %282 = vmatpush1.msra.mxu0 0.0
    %283 = vmatprep.subr.mxu0 0.0
    %284 = vmatpush1.msra.mxu0 0.0
    %285 = vmatprep.subr.mxu0 0.0
    %286 = vmatpush1.msra.mxu0 0.0
    %287 = vmatprep.subr.mxu0 0.0
    %288 = vmatpush1.msra.mxu0 0.0
    %289 = vmatprep.subr.mxu0 0.0
    %290 = vmatpush1.msra.mxu0 0.0
    %291 = vmatprep.subr.mxu0 0.0
    %292 = vmatpush1.msra.mxu0 0.0
    %293 = vmatprep.subr.mxu0 0.0
    %294 = vmatpush1.msra.mxu0 0.0
    %295 = vmatprep.mubr.f32.mxu0 0.0
    %296 = vmatmul.mubr.f32.gmra.mrb[0].mxu0 %v213
    %v297 = vpop.f32.mrb[0].mxu0
    %v298 = vadd.f32 0.0, %v297
    %v299 = vpop.f32.mrb[0].mxu0
    %300 = vdwg.mxu0
    %v301 = vadd.f32 %v214, %v298
    %v302 = vtanh.pop %v301
    %303 = vst [vmem:[#allocation2] sm:$0xff] %v302
    %s304 = scalar_lea.vmem [#allocation2], 8
    %v305 = vld [vmem:[%s304] sm:$0xff]
    %v306 = vld [vmem:[#allocation3] sm:$0xff]
    %v307 = vld [vmem:[#allocation3 + $0x8] sm:$0xff]
    %v308 = vld [vmem:[#allocation3 + $0x10] sm:$0xff]
    %v309 = vld [vmem:[#allocation3 + $0x18] sm:$0xff]
    %v310 = vld [vmem:[#allocation3 + $0x20] sm:$0xff]
    %v311 = vld [vmem:[#allocation3 + $0x28] sm:$0xff]
    %v312 = vld [vmem:[#allocation3 + $0x30] sm:$0xff]
    %v313 = vld [vmem:[#allocation3 + $0x38] sm:$0xff]
    %v314 = vld [vmem:[#allocation3 + $0x40] sm:$0xff]
    %v315 = vld [vmem:[#allocation3 + $0x48] sm:$0xff]
    %v316 = vld [vmem:[#allocation3 + $0x50] sm:$0xff]
    %v317 = vld [vmem:[#allocation3 + $0x58] sm:$0xff]
    %v318 = vld [vmem:[#allocation3 + $0x60] sm:$0xff]
    %v319 = vld [vmem:[#allocation3 + $0x68] sm:$0xff]
    %v320 = vld [vmem:[#allocation3 + $0x70] sm:$0xff]
    %v321 = vld [vmem:[#allocation3 + $0x78] sm:$0xff]
    %322 = vmatprep.subr.mxu0 0.0
    %323 = vmatpush1.msra.mxu0 %v306
    %324 = vmatprep.subr.mxu0 0.0
    %325 = vmatpush1.msra.mxu0 %v307
    %326 = vmatprep.subr.mxu0 0.0
    %327 = vmatpush1.msra.mxu0 %v308
    %328 = vmatprep.subr.mxu0 0.0
    %329 = vmatpush1.msra.mxu0 %v309
    %330 = vmatprep.subr.mxu0 0.0
    %331 = vmatpush1.msra.mxu0 %v310
    %332 = vmatprep.subr.mxu0 0.0
    %333 = vmatpush1.msra.mxu0 %v311
    %334 = vmatprep.subr.mxu0 0.0
    %335 = vmatpush1.msra.mxu0 %v312
    %336 = vmatprep.subr.mxu0 0.0
    %337 = vmatpush1.msra.mxu0 %v313
    %338 = vmatprep.subr.mxu0 0.0
    %339 = vmatpush1.msra.mxu0 %v314
    %340 = vmatprep.subr.mxu0 0.0
    %341 = vmatpush1.msra.mxu0 %v315
    %342 = vmatprep.subr.mxu0 0.0
    %343 = vmatpush1.msra.mxu0 %v316
    %344 = vmatprep.subr.mxu0 0.0
    %345 = vmatpush1.msra.mxu0 %v317
    %346 = vmatprep.subr.mxu0 0.0
    %347 = vmatpush1.msra.mxu0 %v318
    %348 = vmatprep.subr.mxu0 0.0
    %349 = vmatpush1.msra.mxu0 %v319
    %350 = vmatprep.subr.mxu0 0.0
    %351 = vmatpush1.msra.mxu0 %v320
    %352 = vmatprep.subr.mxu0 0.0
    %353 = vmatpush1.msra.mxu0 %v321
    %354 = vmatprep.subr.mxu0 0.0
    %355 = vmatpush1.msra.mxu0 0.0
    %356 = vmatprep.subr.mxu0 0.0
    %357 = vmatpush1.msra.mxu0 0.0
    %358 = vmatprep.subr.mxu0 0.0
    %359 = vmatpush1.msra.mxu0 0.0
    %360 = vmatprep.subr.mxu0 0.0
    %361 = vmatpush1.msra.mxu0 0.0
    %362 = vmatprep.subr.mxu0 0.0
    %363 = vmatpush1.msra.mxu0 0.0
    %364 = vmatprep.subr.mxu0 0.0
    %365 = vmatpush1.msra.mxu0 0.0
    %366 = vmatprep.subr.mxu0 0.0
    %367 = vmatpush1.msra.mxu0 0.0
    %368 = vmatprep.subr.mxu0 0.0
    %369 = vmatpush1.msra.mxu0 0.0
    %370 = vmatprep.subr.mxu0 0.0
    %371 = vmatpush1.msra.mxu0 0.0
    %372 = vmatprep.subr.mxu0 0.0
    %373 = vmatpush1.msra.mxu0 0.0
    %374 = vmatprep.subr.mxu0 0.0
    %375 = vmatpush1.msra.mxu0 0.0
    %376 = vmatprep.subr.mxu0 0.0
    %377 = vmatpush1.msra.mxu0 0.0
    %378 = vmatprep.subr.mxu0 0.0
    %379 = vmatpush1.msra.mxu0 0.0
    %380 = vmatprep.subr.mxu0 0.0
    %381 = vmatpush1.msra.mxu0 0.0
    %382 = vmatprep.subr.mxu0 0.0
    %383 = vmatpush1.msra.mxu0 0.0
    %384 = vmatprep.subr.mxu0 0.0
    %385 = vmatpush1.msra.mxu0 0.0
    %386 = vmatprep.mubr.f32.mxu0 0.0
    %387 = vmatmul.mubr.f32.gmra.mrb[0].mxu0 %v302
    %v388 = vpop.f32.mrb[0].mxu0
    %v389 = vadd.f32 0.0, %v388
    %v390 = vpop.f32.mrb[0].mxu0
    %391 = vdwg.mxu0
    %v392 = vadd.f32 %v305, %v389
    %v393 = vtanh.pop %v392
    %394 = vst [vmem:[%s304] sm:$0xff] %v393
    %s395 = scalar_lea.vmem [#allocation2], 16
    %v396 = vld [vmem:[%s395] sm:$0xff]
    %v397 = vld [vmem:[#allocation3] sm:$0xff]
    %v398 = vld [vmem:[#allocation3 + $0x8] sm:$0xff]
    %v399 = vld [vmem:[#allocation3 + $0x10] sm:$0xff]
    %v400 = vld [vmem:[#allocation3 + $0x18] sm:$0xff]
    %v401 = vld [vmem:[#allocation3 + $0x20] sm:$0xff]
    %v402 = vld [vmem:[#allocation3 + $0x28] sm:$0xff]
    %v403 = vld [vmem:[#allocation3 + $0x30] sm:$0xff]
    %v404 = vld [vmem:[#allocation3 + $0x38] sm:$0xff]
    %v405 = vld [vmem:[#allocation3 + $0x40] sm:$0xff]
    %v406 = vld [vmem:[#allocation3 + $0x48] sm:$0xff]
    %v407 = vld [vmem:[#allocation3 + $0x50] sm:$0xff]
    %v408 = vld [vmem:[#allocation3 + $0x58] sm:$0xff]
    %v409 = vld [vmem:[#allocation3 + $0x60] sm:$0xff]
    %v410 = vld [vmem:[#allocation3 + $0x68] sm:$0xff]
    %v411 = vld [vmem:[#allocation3 + $0x70] sm:$0xff]
    %v412 = vld [vmem:[#allocation3 + $0x78] sm:$0xff]
    %413 = vmatprep.subr.mxu0 0.0
    %414 = vmatpush1.msra.mxu0 %v397
    %415 = vmatprep.subr.mxu0 0.0
    %416 = vmatpush1.msra.mxu0 %v398
    %417 = vmatprep.subr.mxu0 0.0
    %418 = vmatpush1.msra.mxu0 %v399
    %419 = vmatprep.subr.mxu0 0.0
    %420 = vmatpush1.msra.mxu0 %v400
    %421 = vmatprep.subr.mxu0 0.0
    %422 = vmatpush1.msra.mxu0 %v401
    %423 = vmatprep.subr.mxu0 0.0
    %424 = vmatpush1.msra.mxu0 %v402
    %425 = vmatprep.subr.mxu0 0.0
    %426 = vmatpush1.msra.mxu0 %v403
    %427 = vmatprep.subr.mxu0 0.0
    %428 = vmatpush1.msra.mxu0 %v404
    %429 = vmatprep.subr.mxu0 0.0
    %430 = vmatpush1.msra.mxu0 %v405
    %431 = vmatprep.subr.mxu0 0.0
    %432 = vmatpush1.msra.mxu0 %v406
    %433 = vmatprep.subr.mxu0 0.0
    %434 = vmatpush1.msra.mxu0 %v407
    %435 = vmatprep.subr.mxu0 0.0
    %436 = vmatpush1.msra.mxu0 %v408
    %437 = vmatprep.subr.mxu0 0.0
    %438 = vmatpush1.msra.mxu0 %v409
    %439 = vmatprep.subr.mxu0 0.0
    %440 = vmatpush1.msra.mxu0 %v410
    %441 = vmatprep.subr.mxu0 0.0
    %442 = vmatpush1.msra.mxu0 %v411
    %443 = vmatprep.subr.mxu0 0.0
    %444 = vmatpush1.msra.mxu0 %v412
    %445 = vmatprep.subr.mxu0 0.0
    %446 = vmatpush1.msra.mxu0 0.0
    %447 = vmatprep.subr.mxu0 0.0
    %448 = vmatpush1.msra.mxu0 0.0
    %449 = vmatprep.subr.mxu0 0.0
    %450 = vmatpush1.msra.mxu0 0.0
    %451 = vmatprep.subr.mxu0 0.0
    %452 = vmatpush1.msra.mxu0 0.0
    %453 = vmatprep.subr.mxu0 0.0
    %454 = vmatpush1.msra.mxu0 0.0
    %455 = vmatprep.subr.mxu0 0.0
    %456 = vmatpush1.msra.mxu0 0.0
    %457 = vmatprep.subr.mxu0 0.0
    %458 = vmatpush1.msra.mxu0 0.0
    %459 = vmatprep.subr.mxu0 0.0
    %460 = vmatpush1.msra.mxu0 0.0
    %461 = vmatprep.subr.mxu0 0.0
    %462 = vmatpush1.msra.mxu0 0.0
    %463 = vmatprep.subr.mxu0 0.0
    %464 = vmatpush1.msra.mxu0 0.0
    %465 = vmatprep.subr.mxu0 0.0
    %466 = vmatpush1.msra.mxu0 0.0
    %467 = vmatprep.subr.mxu0 0.0
    %468 = vmatpush1.msra.mxu0 0.0
    %469 = vmatprep.subr.mxu0 0.0
    %470 = vmatpush1.msra.mxu0 0.0
    %471 = vmatprep.subr.mxu0 0.0
    %472 = vmatpush1.msra.mxu0 0.0
    %473 = vmatprep.subr.mxu0 0.0
    %474 = vmatpush1.msra.mxu0 0.0
    %475 = vmatprep.subr.mxu0 0.0
    %476 = vmatpush1.msra.mxu0 0.0
    %477 = vmatprep.mubr.f32.mxu0 0.0
    %478 = vmatmul.mubr.f32.gmra.mrb[0].mxu0 %v393
    %v479 = vpop.f32.mrb[0].mxu0
    %v480 = vadd.f32 0.0, %v479
    %v481 = vpop.f32.mrb[0].mxu0
    %482 = vdwg.mxu0
    %v483 = vadd.f32 %v396, %v480
    %v484 = vtanh.pop %v483
    %485 = vst [vmem:[%s395] sm:$0xff] %v484
    %s486 = scalar_lea.vmem [#allocation2], 24
    %v487 = vld [vmem:[%s486] sm:$0xff]
    %v488 = vld [vmem:[#allocation3] sm:$0xff]
    %v489 = vld [vmem:[#allocation3 + $0x8] sm:$0xff]
    %v490 = vld [vmem:[#allocation3 + $0x10] sm:$0xff]
    %v491 = vld [vmem:[#allocation3 + $0x18] sm:$0xff]
    %v492 = vld [vmem:[#allocation3 + $0x20] sm:$0xff]
    %v493 = vld [vmem:[#allocation3 + $0x28] sm:$0xff]
    %v494 = vld [vmem:[#allocation3 + $0x30] sm:$0xff]
    %v495 = vld [vmem:[#allocation3 + $0x38] sm:$0xff]
    %v496 = vld [vmem:[#allocation3 + $0x40] sm:$0xff]
    %v497 = vld [vmem:[#allocation3 + $0x48] sm:$0xff]
    %v498 = vld [vmem:[#allocation3 + $0x50] sm:$0xff]
    %v499 = vld [vmem:[#allocation3 + $0x58] sm:$0xff]
    %v500 = vld [vmem:[#allocation3 + $0x60] sm:$0xff]
    %v501 = vld [vmem:[#allocation3 + $0x68] sm:$0xff]
    %v502 = vld [vmem:[#allocation3 + $0x70] sm:$0xff]
    %v503 = vld [vmem:[#allocation3 + $0x78] sm:$0xff]
    %504 = vmatprep.subr.mxu0 0.0
    %505 = vmatpush1.msra.mxu0 %v488
    %506 = vmatprep.subr.mxu0 0.0
    %507 = vmatpush1.msra.mxu0 %v489
    %508 = vmatprep.subr.mxu0 0.0
    %509 = vmatpush1.msra.mxu0 %v490
    %510 = vmatprep.subr.mxu0 0.0
    %511 = vmatpush1.msra.mxu0 %v491
    %512 = vmatprep.subr.mxu0 0.0
    %513 = vmatpush1.msra.mxu0 %v492
    %514 = vmatprep.subr.mxu0 0.0
    %515 = vmatpush1.msra.mxu0 %v493
    %516 = vmatprep.subr.mxu0 0.0
    %517 = vmatpush1.msra.mxu0 %v494
    %518 = vmatprep.subr.mxu0 0.0
    %519 = vmatpush1.msra.mxu0 %v495
    %520 = vmatprep.subr.mxu0 0.0
    %521 = vmatpush1.msra.mxu0 %v496
    %522 = vmatprep.subr.mxu0 0.0
    %523 = vmatpush1.msra.mxu0 %v497
    %524 = vmatprep.subr.mxu0 0.0
    %525 = vmatpush1.msra.mxu0 %v498
    %526 = vmatprep.subr.mxu0 0.0
    %527 = vmatpush1.msra.mxu0 %v499
    %528 = vmatprep.subr.mxu0 0.0
    %529 = vmatpush1.msra.mxu0 %v500
    %530 = vmatprep.subr.mxu0 0.0
    %531 = vmatpush1.msra.mxu0 %v501
    %532 = vmatprep.subr.mxu0 0.0
    %533 = vmatpush1.msra.mxu0 %v502
    %534 = vmatprep.subr.mxu0 0.0
    %535 = vmatpush1.msra.mxu0 %v503
    %536 = vmatprep.subr.mxu0 0.0
    %537 = vmatpush1.msra.mxu0 0.0
    %538 = vmatprep.subr.mxu0 0.0
    %539 = vmatpush1.msra.mxu0 0.0
    %540 = vmatprep.subr.mxu0 0.0
    %541 = vmatpush1.msra.mxu0 0.0
    %542 = vmatprep.subr.mxu0 0.0
    %543 = vmatpush1.msra.mxu0 0.0
    %544 = vmatprep.subr.mxu0 0.0
    %545 = vmatpush1.msra.mxu0 0.0
    %546 = vmatprep.subr.mxu0 0.0
    %547 = vmatpush1.msra.mxu0 0.0
    %548 = vmatprep.subr.mxu0 0.0
    %549 = vmatpush1.msra.mxu0 0.0
    %550 = vmatprep.subr.mxu0 0.0
    %551 = vmatpush1.msra.mxu0 0.0
    %552 = vmatprep.subr.mxu0 0.0
    %553 = vmatpush1.msra.mxu0 0.0
    %554 = vmatprep.subr.mxu0 0.0
    %555 = vmatpush1.msra.mxu0 0.0
    %556 = vmatprep.subr.mxu0 0.0
    %557 = vmatpush1.msra.mxu0 0.0
    %558 = vmatprep.subr.mxu0 0.0
    %559 = vmatpush1.msra.mxu0 0.0
    %560 = vmatprep.subr.mxu0 0.0
    %561 = vmatpush1.msra.mxu0 0.0
    %562 = vmatprep.subr.mxu0 0.0
    %563 = vmatpush1.msra.mxu0 0.0
    %564 = vmatprep.subr.mxu0 0.0
    %565 = vmatpush1.msra.mxu0 0.0
    %566 = vmatprep.subr.mxu0 0.0
    %567 = vmatpush1.msra.mxu0 0.0
    %568 = vmatprep.mubr.f32.mxu0 0.0
    %569 = vmatmul.mubr.f32.gmra.mrb[0].mxu0 %v484
    %v570 = vpop.f32.mrb[0].mxu0
    %v571 = vadd.f32 0.0, %v570
    %v572 = vpop.f32.mrb[0].mxu0
    %573 = vdwg.mxu0
    %v574 = vadd.f32 %v487, %v571
    %v575 = vtanh.pop %v574
    %576 = vst [vmem:[%s486] sm:$0xff] %v575
    %s577 = scalar_lea.vmem [#allocation2], 32
    %v578 = vld [vmem:[%s577] sm:$0xff]
    %v579 = vld [vmem:[#allocation3] sm:$0xff]
    %v580 = vld [vmem:[#allocation3 + $0x8] sm:$0xff]
    %v581 = vld [vmem:[#allocation3 + $0x10] sm:$0xff]
    %v582 = vld [vmem:[#allocation3 + $0x18] sm:$0xff]
    %v583 = vld [vmem:[#allocation3 + $0x20] sm:$0xff]
    %v584 = vld [vmem:[#allocation3 + $0x28] sm:$0xff]
    %v585 = vld [vmem:[#allocation3 + $0x30] sm:$0xff]
    %v586 = vld [vmem:[#allocation3 + $0x38] sm:$0xff]
    %v587 = vld [vmem:[#allocation3 + $0x40] sm:$0xff]
    %v588 = vld [vmem:[#allocation3 + $0x48] sm:$0xff]
    %v589 = vld [vmem:[#allocation3 + $0x50] sm:$0xff]
    %v590 = vld [vmem:[#allocation3 + $0x58] sm:$0xff]
    %v591 = vld [vmem:[#allocation3 + $0x60] sm:$0xff]
    %v592 = vld [vmem:[#allocation3 + $0x68] sm:$0xff]
    %v593 = vld [vmem:[#allocation3 + $0x70] sm:$0xff]
    %v594 = vld [vmem:[#allocation3 + $0x78] sm:$0xff]
    %595 = vmatprep.subr.mxu0 0.0
    %596 = vmatpush1.msra.mxu0 %v579
    %597 = vmatprep.subr.mxu0 0.0
    %598 = vmatpush1.msra.mxu0 %v580
    %599 = vmatprep.subr.mxu0 0.0
    %600 = vmatpush1.msra.mxu0 %v581
    %601 = vmatprep.subr.mxu0 0.0
    %602 = vmatpush1.msra.mxu0 %v582
    %603 = vmatprep.subr.mxu0 0.0
    %604 = vmatpush1.msra.mxu0 %v583
    %605 = vmatprep.subr.mxu0 0.0
    %606 = vmatpush1.msra.mxu0 %v584
    %607 = vmatprep.subr.mxu0 0.0
    %608 = vmatpush1.msra.mxu0 %v585
    %609 = vmatprep.subr.mxu0 0.0
    %610 = vmatpush1.msra.mxu0 %v586
    %611 = vmatprep.subr.mxu0 0.0
    %612 = vmatpush1.msra.mxu0 %v587
    %613 = vmatprep.subr.mxu0 0.0
    %614 = vmatpush1.msra.mxu0 %v588
    %615 = vmatprep.subr.mxu0 0.0
    %616 = vmatpush1.msra.mxu0 %v589
    %617 = vmatprep.subr.mxu0 0.0
    %618 = vmatpush1.msra.mxu0 %v590
    %619 = vmatprep.subr.mxu0 0.0
    %620 = vmatpush1.msra.mxu0 %v591
    %621 = vmatprep.subr.mxu0 0.0
    %622 = vmatpush1.msra.mxu0 %v592
    %623 = vmatprep.subr.mxu0 0.0
    %624 = vmatpush1.msra.mxu0 %v593
    %625 = vmatprep.subr.mxu0 0.0
    %626 = vmatpush1.msra.mxu0 %v594
    %627 = vmatprep.subr.mxu0 0.0
    %628 = vmatpush1.msra.mxu0 0.0
    %629 = vmatprep.subr.mxu0 0.0
    %630 = vmatpush1.msra.mxu0 0.0
    %631 = vmatprep.subr.mxu0 0.0
    %632 = vmatpush1.msra.mxu0 0.0
    %633 = vmatprep.subr.mxu0 0.0
    %634 = vmatpush1.msra.mxu0 0.0
    %635 = vmatprep.subr.mxu0 0.0
    %636 = vmatpush1.msra.mxu0 0.0
    %637 = vmatprep.subr.mxu0 0.0
    %638 = vmatpush1.msra.mxu0 0.0
    %639 = vmatprep.subr.mxu0 0.0
    %640 = vmatpush1.msra.mxu0 0.0
    %641 = vmatprep.subr.mxu0 0.0
    %642 = vmatpush1.msra.mxu0 0.0
    %643 = vmatprep.subr.mxu0 0.0
    %644 = vmatpush1.msra.mxu0 0.0
    %645 = vmatprep.subr.mxu0 0.0
    %646 = vmatpush1.msra.mxu0 0.0
    %647 = vmatprep.subr.mxu0 0.0
    %648 = vmatpush1.msra.mxu0 0.0
    %649 = vmatprep.subr.mxu0 0.0
    %650 = vmatpush1.msra.mxu0 0.0
    %651 = vmatprep.subr.mxu0 0.0
    %652 = vmatpush1.msra.mxu0 0.0
    %653 = vmatprep.subr.mxu0 0.0
    %654 = vmatpush1.msra.mxu0 0.0
    %655 = vmatprep.subr.mxu0 0.0
    %656 = vmatpush1.msra.mxu0 0.0
    %657 = vmatprep.subr.mxu0 0.0
    %658 = vmatpush1.msra.mxu0 0.0
    %659 = vmatprep.mubr.f32.mxu0 0.0
    %660 = vmatmul.mubr.f32.gmra.mrb[0].mxu0 %v575
    %v661 = vpop.f32.mrb[0].mxu0
    %v662 = vadd.f32 0.0, %v661
    %v663 = vpop.f32.mrb[0].mxu0
    %664 = vdwg.mxu0
    %v665 = vadd.f32 %v578, %v662
    %v666 = vtanh.pop %v665
    %667 = vst [vmem:[%s577] sm:$0xff] %v666
    %s668 = scalar_lea.vmem [#allocation2], 40
    %v669 = vld [vmem:[%s668] sm:$0xff]
    %v670 = vld [vmem:[#allocation3] sm:$0xff]
    %v671 = vld [vmem:[#allocation3 + $0x8] sm:$0xff]
    %v672 = vld [vmem:[#allocation3 + $0x10] sm:$0xff]
    %v673 = vld [vmem:[#allocation3 + $0x18] sm:$0xff]
    %v674 = vld [vmem:[#allocation3 + $0x20] sm:$0xff]
    %v675 = vld [vmem:[#allocation3 + $0x28] sm:$0xff]
    %v676 = vld [vmem:[#allocation3 + $0x30] sm:$0xff]
    %v677 = vld [vmem:[#allocation3 + $0x38] sm:$0xff]
    %v678 = vld [vmem:[#allocation3 + $0x40] sm:$0xff]
    %v679 = vld [vmem:[#allocation3 + $0x48] sm:$0xff]
    %v680 = vld [vmem:[#allocation3 + $0x50] sm:$0xff]
    %v681 = vld [vmem:[#allocation3 + $0x58] sm:$0xff]
    %v682 = vld [vmem:[#allocation3 + $0x60] sm:$0xff]
    %v683 = vld [vmem:[#allocation3 + $0x68] sm:$0xff]
    %v684 = vld [vmem:[#allocation3 + $0x70] sm:$0xff]
    %v685 = vld [vmem:[#allocation3 + $0x78] sm:$0xff]
    %686 = vmatprep.subr.mxu0 0.0
    %687 = vmatpush1.msra.mxu0 %v670
    %688 = vmatprep.subr.mxu0 0.0
    %689 = vmatpush1.msra.mxu0 %v671
    %690 = vmatprep.subr.mxu0 0.0
    %691 = vmatpush1.msra.mxu0 %v672
    %692 = vmatprep.subr.mxu0 0.0
    %693 = vmatpush1.msra.mxu0 %v673
    %694 = vmatprep.subr.mxu0 0.0
    %695 = vmatpush1.msra.mxu0 %v674
    %696 = vmatprep.subr.mxu0 0.0
    %697 = vmatpush1.msra.mxu0 %v675
    %698 = vmatprep.subr.mxu0 0.0
    %699 = vmatpush1.msra.mxu0 %v676
    %700 = vmatprep.subr.mxu0 0.0
    %701 = vmatpush1.msra.mxu0 %v677
    %702 = vmatprep.subr.mxu0 0.0
    %703 = vmatpush1.msra.mxu0 %v678
    %704 = vmatprep.subr.mxu0 0.0
    %705 = vmatpush1.msra.mxu0 %v679
    %706 = vmatprep.subr.mxu0 0.0
    %707 = vmatpush1.msra.mxu0 %v680
    %708 = vmatprep.subr.mxu0 0.0
    %709 = vmatpush1.msra.mxu0 %v681
    %710 = vmatprep.subr.mxu0 0.0
    %711 = vmatpush1.msra.mxu0 %v682
    %712 = vmatprep.subr.mxu0 0.0
    %713 = vmatpush1.msra.mxu0 %v683
    %714 = vmatprep.subr.mxu0 0.0
    %715 = vmatpush1.msra.mxu0 %v684
    %716 = vmatprep.subr.mxu0 0.0
    %717 = vmatpush1.msra.mxu0 %v685
    %718 = vmatprep.subr.mxu0 0.0
    %719 = vmatpush1.msra.mxu0 0.0
    %720 = vmatprep.subr.mxu0 0.0
    %721 = vmatpush1.msra.mxu0 0.0
    %722 = vmatprep.subr.mxu0 0.0
    %723 = vmatpush1.msra.mxu0 0.0
    %724 = vmatprep.subr.mxu0 0.0
    %725 = vmatpush1.msra.mxu0 0.0
    %726 = vmatprep.subr.mxu0 0.0
    %727 = vmatpush1.msra.mxu0 0.0
    %728 = vmatprep.subr.mxu0 0.0
    %729 = vmatpush1.msra.mxu0 0.0
    %730 = vmatprep.subr.mxu0 0.0
    %731 = vmatpush1.msra.mxu0 0.0
    %732 = vmatprep.subr.mxu0 0.0
    %733 = vmatpush1.msra.mxu0 0.0
    %734 = vmatprep.subr.mxu0 0.0
    %735 = vmatpush1.msra.mxu0 0.0
    %736 = vmatprep.subr.mxu0 0.0
    %737 = vmatpush1.msra.mxu0 0.0
    %738 = vmatprep.subr.mxu0 0.0
    %739 = vmatpush1.msra.mxu0 0.0
    %740 = vmatprep.subr.mxu0 0.0
    %741 = vmatpush1.msra.mxu0 0.0
    %742 = vmatprep.subr.mxu0 0.0
    %743 = vmatpush1.msra.mxu0 0.0
    %744 = vmatprep.subr.mxu0 0.0
    %745 = vmatpush1.msra.mxu0 0.0
    %746 = vmatprep.subr.mxu0 0.0
    %747 = vmatpush1.msra.mxu0 0.0
    %748 = vmatprep.subr.mxu0 0.0
    %749 = vmatpush1.msra.mxu0 0.0
    %750 = vmatprep.mubr.f32.mxu0 0.0
    %751 = vmatmul.mubr.f32.gmra.mrb[0].mxu0 %v666
    %v752 = vpop.f32.mrb[0].mxu0
    %v753 = vadd.f32 0.0, %v752
    %v754 = vpop.f32.mrb[0].mxu0
    %755 = vdwg.mxu0
    %v756 = vadd.f32 %v669, %v753
    %v757 = vtanh.pop %v756
    %758 = vst [vmem:[%s668] sm:$0xff] %v757
    %s759 = scalar_lea.vmem [#allocation2], 48
    %v760 = vld [vmem:[%s759] sm:$0xff]
    %v761 = vld [vmem:[#allocation3] sm:$0xff]
    %v762 = vld [vmem:[#allocation3 + $0x8] sm:$0xff]
    %v763 = vld [vmem:[#allocation3 + $0x10] sm:$0xff]
    %v764 = vld [vmem:[#allocation3 + $0x18] sm:$0xff]
    %v765 = vld [vmem:[#allocation3 + $0x20] sm:$0xff]
    %v766 = vld [vmem:[#allocation3 + $0x28] sm:$0xff]
    %v767 = vld [vmem:[#allocation3 + $0x30] sm:$0xff]
    %v768 = vld [vmem:[#allocation3 + $0x38] sm:$0xff]
    %v769 = vld [vmem:[#allocation3 + $0x40] sm:$0xff]
    %v770 = vld [vmem:[#allocation3 + $0x48] sm:$0xff]
    %v771 = vld [vmem:[#allocation3 + $0x50] sm:$0xff]
    %v772 = vld [vmem:[#allocation3 + $0x58] sm:$0xff]
    %v773 = vld [vmem:[#allocation3 + $0x60] sm:$0xff]
    %v774 = vld [vmem:[#allocation3 + $0x68] sm:$0xff]
    %v775 = vld [vmem:[#allocation3 + $0x70] sm:$0xff]
    %v776 = vld [vmem:[#allocation3 + $0x78] sm:$0xff]
    %777 = vmatprep.subr.mxu0 0.0
    %778 = vmatpush1.msra.mxu0 %v761
    %779 = vmatprep.subr.mxu0 0.0
    %780 = vmatpush1.msra.mxu0 %v762
    %781 = vmatprep.subr.mxu0 0.0
    %782 = vmatpush1.msra.mxu0 %v763
    %783 = vmatprep.subr.mxu0 0.0
    %784 = vmatpush1.msra.mxu0 %v764
    %785 = vmatprep.subr.mxu0 0.0
    %786 = vmatpush1.msra.mxu0 %v765
    %787 = vmatprep.subr.mxu0 0.0
    %788 = vmatpush1.msra.mxu0 %v766
    %789 = vmatprep.subr.mxu0 0.0
    %790 = vmatpush1.msra.mxu0 %v767
    %791 = vmatprep.subr.mxu0 0.0
    %792 = vmatpush1.msra.mxu0 %v768
    %793 = vmatprep.subr.mxu0 0.0
    %794 = vmatpush1.msra.mxu0 %v769
    %795 = vmatprep.subr.mxu0 0.0
    %796 = vmatpush1.msra.mxu0 %v770
    %797 = vmatprep.subr.mxu0 0.0
    %798 = vmatpush1.msra.mxu0 %v771
    %799 = vmatprep.subr.mxu0 0.0
    %800 = vmatpush1.msra.mxu0 %v772
    %801 = vmatprep.subr.mxu0 0.0
    %802 = vmatpush1.msra.mxu0 %v773
    %803 = vmatprep.subr.mxu0 0.0
    %804 = vmatpush1.msra.mxu0 %v774
    %805 = vmatprep.subr.mxu0 0.0
    %806 = vmatpush1.msra.mxu0 %v775
    %807 = vmatprep.subr.mxu0 0.0
    %808 = vmatpush1.msra.mxu0 %v776
    %809 = vmatprep.subr.mxu0 0.0
    %810 = vmatpush1.msra.mxu0 0.0
    %811 = vmatprep.subr.mxu0 0.0
    %812 = vmatpush1.msra.mxu0 0.0
    %813 = vmatprep.subr.mxu0 0.0
    %814 = vmatpush1.msra.mxu0 0.0
    %815 = vmatprep.subr.mxu0 0.0
    %816 = vmatpush1.msra.mxu0 0.0
    %817 = vmatprep.subr.mxu0 0.0
    %818 = vmatpush1.msra.mxu0 0.0
    %819 = vmatprep.subr.mxu0 0.0
    %820 = vmatpush1.msra.mxu0 0.0
    %821 = vmatprep.subr.mxu0 0.0
    %822 = vmatpush1.msra.mxu0 0.0
    %823 = vmatprep.subr.mxu0 0.0
    %824 = vmatpush1.msra.mxu0 0.0
    %825 = vmatprep.subr.mxu0 0.0
    %826 = vmatpush1.msra.mxu0 0.0
    %827 = vmatprep.subr.mxu0 0.0
    %828 = vmatpush1.msra.mxu0 0.0
    %829 = vmatprep.subr.mxu0 0.0
    %830 = vmatpush1.msra.mxu0 0.0
    %831 = vmatprep.subr.mxu0 0.0
    %832 = vmatpush1.msra.mxu0 0.0
    %833 = vmatprep.subr.mxu0 0.0
    %834 = vmatpush1.msra.mxu0 0.0
    %835 = vmatprep.subr.mxu0 0.0
    %836 = vmatpush1.msra.mxu0 0.0
    %837 = vmatprep.subr.mxu0 0.0
    %838 = vmatpush1.msra.mxu0 0.0
    %839 = vmatprep.subr.mxu0 0.0
    %840 = vmatpush1.msra.mxu0 0.0
    %841 = vmatprep.mubr.f32.mxu0 0.0
    %842 = vmatmul.mubr.f32.gmra.mrb[0].mxu0 %v757
    %v843 = vpop.f32.mrb[0].mxu0
    %v844 = vadd.f32 0.0, %v843
    %v845 = vpop.f32.mrb[0].mxu0
    %846 = vdwg.mxu0
    %v847 = vadd.f32 %v760, %v844
    %v848 = vtanh.pop %v847
    %849 = vst [vmem:[%s759] sm:$0xff] %v848
    %s850 = scalar_lea.vmem [#allocation2], 56
    %v851 = vld [vmem:[%s850] sm:$0xff]
    %v852 = vld [vmem:[#allocation3] sm:$0xff]
    %v853 = vld [vmem:[#allocation3 + $0x8] sm:$0xff]
    %v854 = vld [vmem:[#allocation3 + $0x10] sm:$0xff]
    %v855 = vld [vmem:[#allocation3 + $0x18] sm:$0xff]
    %v856 = vld [vmem:[#allocation3 + $0x20] sm:$0xff]
    %v857 = vld [vmem:[#allocation3 + $0x28] sm:$0xff]
    %v858 = vld [vmem:[#allocation3 + $0x30] sm:$0xff]
    %v859 = vld [vmem:[#allocation3 + $0x38] sm:$0xff]
    %v860 = vld [vmem:[#allocation3 + $0x40] sm:$0xff]
    %v861 = vld [vmem:[#allocation3 + $0x48] sm:$0xff]
    %v862 = vld [vmem:[#allocation3 + $0x50] sm:$0xff]
    %v863 = vld [vmem:[#allocation3 + $0x58] sm:$0xff]
    %v864 = vld [vmem:[#allocation3 + $0x60] sm:$0xff]
    %v865 = vld [vmem:[#allocation3 + $0x68] sm:$0xff]
    %v866 = vld [vmem:[#allocation3 + $0x70] sm:$0xff]
    %v867 = vld [vmem:[#allocation3 + $0x78] sm:$0xff]
    %868 = vmatprep.subr.mxu0 0.0
    %869 = vmatpush1.msra.mxu0 %v852
    %870 = vmatprep.subr.mxu0 0.0
    %871 = vmatpush1.msra.mxu0 %v853
    %872 = vmatprep.subr.mxu0 0.0
    %873 = vmatpush1.msra.mxu0 %v854
    %874 = vmatprep.subr.mxu0 0.0
    %875 = vmatpush1.msra.mxu0 %v855
    %876 = vmatprep.subr.mxu0 0.0
    %877 = vmatpush1.msra.mxu0 %v856
    %878 = vmatprep.subr.mxu0 0.0
    %879 = vmatpush1.msra.mxu0 %v857
    %880 = vmatprep.subr.mxu0 0.0
    %881 = vmatpush1.msra.mxu0 %v858
    %882 = vmatprep.subr.mxu0 0.0
    %883 = vmatpush1.msra.mxu0 %v859
    %884 = vmatprep.subr.mxu0 0.0
    %885 = vmatpush1.msra.mxu0 %v860
    %886 = vmatprep.subr.mxu0 0.0
    %887 = vmatpush1.msra.mxu0 %v861
    %888 = vmatprep.subr.mxu0 0.0
    %889 = vmatpush1.msra.mxu0 %v862
    %890 = vmatprep.subr.mxu0 0.0
    %891 = vmatpush1.msra.mxu0 %v863
    %892 = vmatprep.subr.mxu0 0.0
    %893 = vmatpush1.msra.mxu0 %v864
    %894 = vmatprep.subr.mxu0 0.0
    %895 = vmatpush1.msra.mxu0 %v865
    %896 = vmatprep.subr.mxu0 0.0
    %897 = vmatpush1.msra.mxu0 %v866
    %898 = vmatprep.subr.mxu0 0.0
    %899 = vmatpush1.msra.mxu0 %v867
    %900 = vmatprep.subr.mxu0 0.0
    %901 = vmatpush1.msra.mxu0 0.0
    %902 = vmatprep.subr.mxu0 0.0
    %903 = vmatpush1.msra.mxu0 0.0
    %904 = vmatprep.subr.mxu0 0.0
    %905 = vmatpush1.msra.mxu0 0.0
    %906 = vmatprep.subr.mxu0 0.0
    %907 = vmatpush1.msra.mxu0 0.0
    %908 = vmatprep.subr.mxu0 0.0
    %909 = vmatpush1.msra.mxu0 0.0
    %910 = vmatprep.subr.mxu0 0.0
    %911 = vmatpush1.msra.mxu0 0.0
    %912 = vmatprep.subr.mxu0 0.0
    %913 = vmatpush1.msra.mxu0 0.0
    %914 = vmatprep.subr.mxu0 0.0
    %915 = vmatpush1.msra.mxu0 0.0
    %916 = vmatprep.subr.mxu0 0.0
    %917 = vmatpush1.msra.mxu0 0.0
    %918 = vmatprep.subr.mxu0 0.0
    %919 = vmatpush1.msra.mxu0 0.0
    %920 = vmatprep.subr.mxu0 0.0
    %921 = vmatpush1.msra.mxu0 0.0
    %922 = vmatprep.subr.mxu0 0.0
    %923 = vmatpush1.msra.mxu0 0.0
    %924 = vmatprep.subr.mxu0 0.0
    %925 = vmatpush1.msra.mxu0 0.0
    %926 = vmatprep.subr.mxu0 0.0
    %927 = vmatpush1.msra.mxu0 0.0
    %928 = vmatprep.subr.mxu0 0.0
    %929 = vmatpush1.msra.mxu0 0.0
    %930 = vmatprep.subr.mxu0 0.0
    %931 = vmatpush1.msra.mxu0 0.0
    %932 = vmatprep.mubr.f32.mxu0 0.0
    %933 = vmatmul.mubr.f32.gmra.mrb[0].mxu0 %v848
    %v934 = vpop.f32.mrb[0].mxu0
    %v935 = vadd.f32 0.0, %v934
    %v936 = vpop.f32.mrb[0].mxu0
    %937 = vdwg.mxu0
    %v938 = vadd.f32 %v851, %v935
    %v939 = vtanh.pop %v938
    %940 = vst [vmem:[%s850] sm:$0xff] %v939
    %v941 = vld [vmem:[#allocation2] sm:$0xff]
    %v942 = vld [vmem:[#allocation2 + $0x8] sm:$0xff]
    %v943 = vld [vmem:[#allocation2 + $0x10] sm:$0xff]
    %v944 = vld [vmem:[#allocation2 + $0x18] sm:$0xff]
    %v945 = vld [vmem:[#allocation2 + $0x20] sm:$0xff]
    %v946 = vld [vmem:[#allocation2 + $0x28] sm:$0xff]
    %v947 = vld [vmem:[#allocation2 + $0x30] sm:$0xff]
    %v948 = vld [vmem:[#allocation2 + $0x38] sm:$0xff]
    %v949 = vld [vmem:[#allocation6] sm:$0xff]
    %v950 = vld [vmem:[#allocation6 + $0x8] sm:$0xff]
    %v951 = vld [vmem:[#allocation6 + $0x10] sm:$0xff]
    %v952 = vld [vmem:[#allocation6 + $0x18] sm:$0xff]
    %v953 = vld [vmem:[#allocation6 + $0x20] sm:$0xff]
    %v954 = vld [vmem:[#allocation6 + $0x28] sm:$0xff]
    %v955 = vld [vmem:[#allocation6 + $0x30] sm:$0xff]
    %v956 = vld [vmem:[#allocation6 + $0x38] sm:$0xff]
    %v957 = vld [vmem:[#allocation6 + $0x40] sm:$0xff]
    %v958 = vld [vmem:[#allocation6 + $0x48] sm:$0xff]
    %v959 = vld [vmem:[#allocation6 + $0x50] sm:$0xff]
    %v960 = vld [vmem:[#allocation6 + $0x58] sm:$0xff]
    %v961 = vld [vmem:[#allocation6 + $0x60] sm:$0xff]
    %v962 = vld [vmem:[#allocation6 + $0x68] sm:$0xff]
    %v963 = vld [vmem:[#allocation6 + $0x70] sm:$0xff]
    %v964 = vld [vmem:[#allocation6 + $0x78] sm:$0xff]
    %v965 = vld [vmem:[%s6] sm:$0x1]
    %v967 = vlaneseq
    %v968 = vshrl.u32 %v967, 7
    %v969 = vsub.s32 0, %v968
    %v970 = vrot.slane %v965, %v969
    %972 = vmatprep.subr.mxu0 0.0
    %973 = vmatpush1.msra.mxu0 %v949
    %974 = vmatprep.subr.mxu0 0.0
    %975 = vmatpush1.msra.mxu0 %v950
    %976 = vmatprep.subr.mxu0 0.0
    %977 = vmatpush1.msra.mxu0 %v951
    %978 = vmatprep.subr.mxu0 0.0
    %979 = vmatpush1.msra.mxu0 %v952
    %980 = vmatprep.subr.mxu0 0.0
    %981 = vmatpush1.msra.mxu0 %v953
    %982 = vmatprep.subr.mxu0 0.0
    %983 = vmatpush1.msra.mxu0 %v954
    %984 = vmatprep.subr.mxu0 0.0
    %985 = vmatpush1.msra.mxu0 %v955
    %986 = vmatprep.subr.mxu0 0.0
    %987 = vmatpush1.msra.mxu0 %v956
    %988 = vmatprep.subr.mxu0 0.0
    %989 = vmatpush1.msra.mxu0 %v957
    %990 = vmatprep.subr.mxu0 0.0
    %991 = vmatpush1.msra.mxu0 %v958
    %992 = vmatprep.subr.mxu0 0.0
    %993 = vmatpush1.msra.mxu0 %v959
    %994 = vmatprep.subr.mxu0 0.0
    %995 = vmatpush1.msra.mxu0 %v960
    %996 = vmatprep.subr.mxu0 0.0
    %997 = vmatpush1.msra.mxu0 %v961
    %998 = vmatprep.subr.mxu0 0.0
    %999 = vmatpush1.msra.mxu0 %v962
    %1000 = vmatprep.subr.mxu0 0.0
    %1001 = vmatpush1.msra.mxu0 %v963
    %1002 = vmatprep.subr.mxu0 0.0
    %1003 = vmatpush1.msra.mxu0 %v964
    %1004 = vmatprep.subr.mxu0 0.0
    %1005 = vmatpush1.msra.mxu0 0.0
    %1006 = vmatprep.subr.mxu0 0.0
    %1007 = vmatpush1.msra.mxu0 0.0
    %1008 = vmatprep.subr.mxu0 0.0
    %1009 = vmatpush1.msra.mxu0 0.0
    %1010 = vmatprep.subr.mxu0 0.0
    %1011 = vmatpush1.msra.mxu0 0.0
    %1012 = vmatprep.subr.mxu0 0.0
    %1013 = vmatpush1.msra.mxu0 0.0
    %1014 = vmatprep.subr.mxu0 0.0
    %1015 = vmatpush1.msra.mxu0 0.0
    %1016 = vmatprep.subr.mxu0 0.0
    %1017 = vmatpush1.msra.mxu0 0.0
    %1018 = vmatprep.subr.mxu0 0.0
    %1019 = vmatpush1.msra.mxu0 0.0
    %1020 = vmatprep.subr.mxu0 0.0
    %1021 = vmatpush1.msra.mxu0 0.0
    %1022 = vmatprep.subr.mxu0 0.0
    %1023 = vmatpush1.msra.mxu0 0.0
    %1024 = vmatprep.subr.mxu0 0.0
    %1025 = vmatpush1.msra.mxu0 0.0
    %1026 = vmatprep.subr.mxu0 0.0
    %1027 = vmatpush1.msra.mxu0 0.0
    %1028 = vmatprep.subr.mxu0 0.0
    %1029 = vmatpush1.msra.mxu0 0.0
    %1030 = vmatprep.subr.mxu0 0.0
    %1031 = vmatpush1.msra.mxu0 0.0
    %1032 = vmatprep.subr.mxu0 0.0
    %1033 = vmatpush1.msra.mxu0 0.0
    %1034 = vmatprep.subr.mxu0 0.0
    %1035 = vmatpush1.msra.mxu0 0.0
    %1036 = vmatprep.mubr.f32.mxu0 0.0
    %1037 = vmatmul.mubr.f32.gmra.mrb[0].mxu0 %v941
    %v1038 = vpop.f32.mrb[0].mxu0
    %v1039 = vadd.f32 %v970, %v1038
    %v1040 = vpop.f32.mrb[0].mxu0
    %1041 = vmatprep.mubr.f32.mxu0 0.0
    %1042 = vmatmul.mubr.f32.gmra.mrb[0].mxu0 %v942
    %v1043 = vpop.f32.mrb[0].mxu0
    %v1044 = vadd.f32 %v970, %v1043
    %v1045 = vpop.f32.mrb[0].mxu0
    %1046 = vmatprep.mubr.f32.mxu0 0.0
    %1047 = vmatmul.mubr.f32.gmra.mrb[0].mxu0 %v943
    %v1048 = vpop.f32.mrb[0].mxu0
    %v1049 = vadd.f32 %v970, %v1048
    %v1050 = vpop.f32.mrb[0].mxu0
    %1051 = vmatprep.mubr.f32.mxu0 0.0
    %1052 = vmatmul.mubr.f32.gmra.mrb[0].mxu0 %v944
    %v1053 = vpop.f32.mrb[0].mxu0
    %v1054 = vadd.f32 %v970, %v1053
    %v1055 = vpop.f32.mrb[0].mxu0
    %1056 = vmatprep.mubr.f32.mxu0 0.0
    %1057 = vmatmul.mubr.f32.gmra.mrb[0].mxu0 %v945
    %v1058 = vpop.f32.mrb[0].mxu0
    %v1059 = vadd.f32 %v970, %v1058
    %v1060 = vpop.f32.mrb[0].mxu0
    %1061 = vmatprep.mubr.f32.mxu0 0.0
    %1062 = vmatmul.mubr.f32.gmra.mrb[0].mxu0 %v946
    %v1063 = vpop.f32.mrb[0].mxu0
    %v1064 = vadd.f32 %v970, %v1063
    %v1065 = vpop.f32.mrb[0].mxu0
    %1066 = vmatprep.mubr.f32.mxu0 0.0
    %1067 = vmatmul.mubr.f32.gmra.mrb[0].mxu0 %v947
    %v1068 = vpop.f32.mrb[0].mxu0
    %v1069 = vadd.f32 %v970, %v1068
    %v1070 = vpop.f32.mrb[0].mxu0
    %1071 = vmatprep.mubr.f32.mxu0 0.0
    %1072 = vmatmul.mubr.f32.gmra.mrb[0].mxu0 %v948
    %v1073 = vpop.f32.mrb[0].mxu0
    %v1074 = vadd.f32 %v970, %v1073
    %v1075 = vpop.f32.mrb[0].mxu0
    %1076 = vdwg.mxu0
    %1077 = vst [vmem:[#allocation8] sm:$0xff] %v1039
    %1078 = vst [vmem:[#allocation8 + $0x8] sm:$0xff] %v1044
    %1079 = vst [vmem:[#allocation8 + $0x10] sm:$0xff] %v1049
    %1080 = vst [vmem:[#allocation8 + $0x18] sm:$0xff] %v1054
    %1081 = vst [vmem:[#allocation8 + $0x20] sm:$0xff] %v1059
    %1082 = vst [vmem:[#allocation8 + $0x28] sm:$0xff] %v1064
    %1083 = vst [vmem:[#allocation8 + $0x30] sm:$0xff] %v1069
    %1084 = vst [vmem:[#allocation8 + $0x38] sm:$0xff] %v1074
    %1085 = vst [vmem:[#allocation9] sm:$0xff] %v939
    // Predicated region
    $region38: #{tpu_custom_call.1} parent=1 // pred_check
      _
    $region39: #{tpu_custom_call.1} parent=1 // pred_check_branch
      %1087 = sbr.rel (0) target = $region41
    $region40: #{tpu_custom_call.1} parent=1 // pred_region
      %s1089 = ssub.s32 1024, 1024
      %1090 = vsyncadd [#allocation5], %s1089
      %s1091 = sshll.u32 [#allocation8], 4
      %s1092 = int_to_ptr.vmem [resolvable:$true] %s1091
      %1097 = dma.vmem_to_hbm [thread:$0]  %s1092, 1024, %s7, [#allocation5], 128, 128, 8
    $region41: #{tpu_custom_call.1} parent=1 // pred_fallthru
      _
    // Predicated region
    $region42: #{tpu_custom_call.1} parent=1 // pred_check
      _
    $region43: #{tpu_custom_call.1} parent=1 // pred_check_branch
      %1099 = sbr.rel (0) target = $region45
    $region44: #{tpu_custom_call.1} parent=1 // pred_region
      %s1101 = ssub.s32 128, 128
      %1102 = vsyncadd [#allocation10], %s1101
      %s1104 = sshll.u32 [#allocation9], 4
      %s1105 = int_to_ptr.vmem [resolvable:$true] %s1104
      %1107 = dma.vmem_to_hbm [thread:$0]  %s1105, 128, %s8, [#allocation10]
    $region45: #{tpu_custom_call.1} parent=1 // pred_fallthru
      _
    // Predicated region
    $region46: #{tpu_custom_call.1} parent=1 // pred_check
      _
    $region47: #{tpu_custom_call.1} parent=1 // pred_check_branch
      %1109 = sbr.rel (0) target = $region49
    $region48: #{tpu_custom_call.1} parent=1 // pred_region
      %1110 = dma.done [#allocation5], 1024
    $region49: #{tpu_custom_call.1} parent=1 // pred_fallthru
      _
    // Predicated region
    $region50: #{tpu_custom_call.1} parent=1 // pred_check
      _
    $region51: #{tpu_custom_call.1} parent=1 // pred_check_branch
      %1112 = sbr.rel (0) target = $region53
    $region52: #{tpu_custom_call.1} parent=1 // pred_region
      %1113 = dma.done [#allocation10], 128
    $region53: #{tpu_custom_call.1} parent=1 // pred_fallthru
      _
    %1114 = vsyncpa [#allocation4], 1
    %1115 = vsyncpa [#allocation7], 1
    %1116 = vsyncpa [#allocation5], 1
    %1117 = vsyncpa [#allocation10], 1

</llo_original>
